<compile_context>
chip_gen: v7x
topology: tpu7x:2x2x1
jax: 0.10.0
libtpu: 0.0.40
codegen_flags: <defaults>
</compile_context>

<pallas_src>
import functools

import jax
import jax.numpy as jnp
from jax.experimental import pallas as pl
from jax.experimental.pallas import tpu as pltpu

# Default MKMMDLoss kernel bandwidths (gaussian_kernel(sigma_list=[1, 5, 10]))
SIGMA_LIST = (1.0, 5.0, 10.0)
# Added to the squared norm of padded rows; exp(-gamma * penalty) underflows
# to exactly 0 for all gammas used (smallest gamma = 1/200).
_PAD_PENALTY = 1e9


def _round_up(x, m):
    return (x + m - 1) // m * m


def _mkmmd_kernel(s_row_ref, s_col_ref, t_row_ref, t_col_ref,
                  sn_i_ref, sn_j_ref, tn_i_ref, tn_j_ref,
                  out_ref, acc_ss, acc_tt, acc_st,
                  *, ns_blocks, nt_blocks, n_blocks):
    """One (row-block i, col-block j) step of the fused MK-MMD Gram sums."""
    i = pl.program_id(0)
    j = pl.program_id(1)

    @pl.when(j == 0)
    def _init():
        acc_ss[...] = jnp.zeros_like(acc_ss)
        acc_tt[...] = jnp.zeros_like(acc_tt)
        acc_st[...] = jnp.zeros_like(acc_st)

    def gram_partial(x_ref, y_ref, xn_ref, yn_ref):
        # x @ y.T expressed as a feature-dim contraction (no transpose on the
        # tile feeding the MXU).
        xy = jax.lax.dot_general(
            x_ref[...], y_ref[...],
            dimension_numbers=(((1,), (1,)), ((), ())),
            preferred_element_type=jnp.float32)
        # Pairwise squared distances from precomputed norms; padded rows/cols
        # carry +_PAD_PENALTY in their norm, so their kernel values become 0.
        d2 = jnp.maximum(xn_ref[...] + yn_ref[...] - 2.0 * xy, 0.0)
        e1 = jnp.exp(d2 * (-1.0 / 200.0))          # sigma = 10
        e2 = e1 * e1
        k = jnp.exp(d2 * (-0.5)) + e2 * e2 + e1    # sigma = 1, 5, 10 summed
        # Defer the cross-lane reduce: keep a (1, B) lane vector per step.
        return jnp.sum(k, axis=0, keepdims=True)

    # --- K_st (not symmetric): every tile that touches valid rows/cols. -----
    st_preds = []
    if ns_blocks < n_blocks:
        st_preds.append(i < ns_blocks)
    if nt_blocks < n_blocks:
        st_preds.append(j < nt_blocks)

    def _do_st():
        acc_st[...] += gram_partial(s_row_ref, t_col_ref, sn_i_ref, tn_j_ref)

    if st_preds:
        pl.when(functools.reduce(jnp.logical_and, st_preds))(_do_st)
    else:
        _do_st()

    # --- K_ss (symmetric): upper triangle only, off-diagonal weighted by 2. --
    ss_pred = j >= i
    if ns_blocks < n_blocks:
        ss_pred = jnp.logical_and(ss_pred, j < ns_blocks)

    @pl.when(ss_pred)
    def _do_ss():
        w = jnp.where(j > i, 2.0, 1.0)
        acc_ss[...] += w * gram_partial(s_row_ref, s_col_ref, sn_i_ref, sn_j_ref)

    # --- K_tt (symmetric): upper triangle only, off-diagonal weighted by 2. --
    tt_pred = j >= i
    if nt_blocks < n_blocks:
        tt_pred = jnp.logical_and(tt_pred, j < nt_blocks)

    @pl.when(tt_pred)
    def _do_tt():
        w = jnp.where(j > i, 2.0, 1.0)
        acc_tt[...] += w * gram_partial(t_row_ref, t_col_ref, tn_i_ref, tn_j_ref)

    # --- Finalize this row block: one lane-dense (8, B) output write. -------
    @pl.when(j == pl.num_programs(1) - 1)
    def _finalize():
        B = out_ref.shape[2]
        sub = jax.lax.broadcasted_iota(jnp.int32, (8, B), 0)
        blk = jnp.where(sub == 0, acc_ss[...],
              jnp.where(sub == 1, acc_tt[...],
              jnp.where(sub == 2, acc_st[...], 0.0)))
        out_ref[0] = blk


def _vmem_estimate_bytes(B, Dp, feat_itemsize):
    feat = 4 * 2 * B * Dp * feat_itemsize    # 4 feature inputs, double-buffered
    temps = 8 * B * B * 4                    # live (B, B) f32 temporaries
    small = 4 * 2 * 8 * max(B, 128) * 4      # norm tiles (sublane-padded)
    out = 2 * 8 * B * 4                      # output block double-buffer
    acc = 3 * 8 * B * 4                      # VMEM accumulators
    return feat + temps + small + out + acc


def mkmmd_loss(features_s, features_t, *, block=256):
    """Pallas implementation of MKMMDLoss().forward(features_s, features_t).

    features_s: (N_s, D), features_t: (N_t, D).  Returns scalar float32 loss.
    """
    Ns, D = features_s.shape
    Nt, Dt = features_t.shape
    assert D == Dt

    f32 = jnp.float32
    n_max = max(Ns, Nt)
    Dp = _round_up(D, 128)
    feat_itemsize = jnp.dtype(features_s.dtype).itemsize

    # --- tile geometry ------------------------------------------------------
    block = max(128, _round_up(block, 128))
    n_aligned = _round_up(n_max, 128)
    B = min(block, n_aligned)
    # Keep >= 2 row blocks when possible so both v7x TensorCores get work.
    if n_aligned >= 256 and _round_up(n_max, B) // B < 2:
        B = max(128, _round_up(n_aligned // 2, 128))
    # Cap the per-step footprint (conservative budget — fits v7x's 64 MiB with
    # headroom; also fine for v5e/v6e's 128 MiB).
    VMEM_BUDGET = 40 << 20
    while B > 128 and _vmem_estimate_bytes(B, Dp, feat_itemsize) > VMEM_BUDGET:
        B -= 128
    # TODO(synk): for very large D, chunk the feature dim inside the kernel
    # (inner fori_loop accumulating xy/norms) instead of only shrinking B.

    NP = _round_up(n_max, B)
    n_blocks = NP // B
    ns_blocks = -(-Ns // B)
    nt_blocks = -(-Nt // B)

    # --- padded inputs & precomputed (penalty-folded) squared norms ----------
    s_pad = jnp.pad(features_s, ((0, NP - Ns), (0, Dp - D)))
    t_pad = jnp.pad(features_t, ((0, NP - Nt), (0, Dp - D)))

    s_sq = jnp.sum(jnp.square(features_s.astype(f32)), axis=1)
    t_sq = jnp.sum(jnp.square(features_t.astype(f32)), axis=1)
    s_sq = jnp.pad(s_sq, (0, NP - Ns), constant_values=_PAD_PENALTY)
    t_sq = jnp.pad(t_sq, (0, NP - Nt), constant_values=_PAD_PENALTY)
    sn_i = s_sq.reshape(NP, 1)      # (B, 1) blocks, indexed by row block i
    sn_j = s_sq.reshape(1, NP)      # (1, B) blocks, indexed by col block j
    tn_i = t_sq.reshape(NP, 1)
    tn_j = t_sq.reshape(1, NP)

    kernel = functools.partial(_mkmmd_kernel, ns_blocks=ns_blocks,
                               nt_blocks=nt_blocks, n_blocks=n_blocks)

    row_feat = pl.BlockSpec((B, Dp), lambda i, j: (i, 0))
    col_feat = pl.BlockSpec((B, Dp), lambda i, j: (j, 0))
    row_nrm = pl.BlockSpec((B, 1), lambda i, j: (i, 0))
    col_nrm = pl.BlockSpec((1, B), lambda i, j: (0, j))

    vmem_limit = int(min(
        max(_vmem_estimate_bytes(B, Dp, feat_itemsize) * 3 // 2, 16 << 20),
        56 << 20))

    partials = pl.pallas_call(
        kernel,
        out_shape=jax.ShapeDtypeStruct((n_blocks, 8, B), f32),
        grid_spec=pltpu.PrefetchScalarGridSpec(
            num_scalar_prefetch=0,
            grid=(n_blocks, n_blocks),
            in_specs=[row_feat, col_feat, row_feat, col_feat,
                      row_nrm, col_nrm, row_nrm, col_nrm],
            out_specs=pl.BlockSpec((1, 8, B), lambda i, j: (i, 0, 0)),
            scratch_shapes=[pltpu.VMEM((1, B), f32),
                            pltpu.VMEM((1, B), f32),
                            pltpu.VMEM((1, B), f32)],
        ),
        compiler_params=pltpu.CompilerParams(
            dimension_semantics=("parallel", "arbitrary"),
            vmem_limit_bytes=vmem_limit),
    )(s_pad, s_pad, t_pad, t_pad, sn_i, sn_j, tn_i, tn_j)

    sums = jnp.sum(partials, axis=(0, 2))        # rows 0/1/2 = ss / tt / st
    loss = (sums[0] / (Ns * Ns) + sums[1] / (Nt * Nt)
            - 2.0 * sums[2] / (Ns * Nt)) / float(len(SIGMA_LIST))
    return loss


def _mkmmd_loss_ref(features_s, features_t):
    """Pure-JAX reference mirroring the PyTorch module (for validation)."""
    def kern_mean(x, y):
        d2 = jnp.sum((x[:, None, :] - y[None, :, :]) ** 2, axis=-1)
        acc = sum(jnp.exp(-(1.0 / (2.0 * s * s)) * d2) for s in SIGMA_LIST)
        return jnp.mean(acc / len(SIGMA_LIST))
    return (kern_mean(features_s, features_s)
            + kern_mean(features_t, features_t)
            - 2.0 * kern_mean(features_s, features_t))


if __name__ == "__main__":
    key = jax.random.PRNGKey(0)
    k_s, k_t = jax.random.split(key)

    # Small case consistent with the module's forward: (N_s, D) and (N_t, D).
    N_s, N_t, D = 8, 8, 32
    features_s = jax.random.normal(k_s, (N_s, D), dtype=jnp.float32)
    features_t = jax.random.normal(k_t, (N_t, D), dtype=jnp.float32) + 0.5

    loss = mkmmd_loss(features_s, features_t)
    jax.block_until_ready(loss)
    ref = _mkmmd_loss_ref(features_s, features_t)
    assert jnp.allclose(loss, ref, rtol=1e-4, atol=1e-5), (loss, ref)

    # Second case: asymmetric sizes + multi-block grid to exercise the
    # symmetry / padded-tile-skip / boundary-penalty paths.
    k_s2, k_t2 = jax.random.split(jax.random.PRNGKey(1))
    fs2 = jax.random.normal(k_s2, (136, 40), dtype=jnp.float32)
    ft2 = jax.random.normal(k_t2, (72, 40), dtype=jnp.float32) + 0.25
    loss2 = mkmmd_loss(fs2, ft2)
    jax.block_until_ready(loss2)
    ref2 = _mkmmd_loss_ref(fs2, ft2)
    assert jnp.allclose(loss2, ref2, rtol=1e-4, atol=1e-5), (loss2, ref2)

    print("KERNEL_OK")
</pallas_src>

<mosaic_0001>
module attributes {stable_mosaic.version = 11 : i64} {
  func.func @_mkmmd_kernel(%arg0: i32, %arg1: i32, %arg2: memref<128x128xf32, #tpu.memory_space<vmem>>, %arg3: memref<128x128xf32, #tpu.memory_space<vmem>>, %arg4: memref<128x128xf32, #tpu.memory_space<vmem>>, %arg5: memref<128x128xf32, #tpu.memory_space<vmem>>, %arg6: memref<128x1xf32, #tpu.memory_space<vmem>>, %arg7: memref<1x128xf32, #tpu.memory_space<vmem>>, %arg8: memref<128x1xf32, #tpu.memory_space<vmem>>, %arg9: memref<1x128xf32, #tpu.memory_space<vmem>>, %arg10: memref<1x8x128xf32, #tpu.memory_space<vmem>>, %arg11: memref<1x128xf32, #tpu.memory_space<vmem>>, %arg12: memref<1x128xf32, #tpu.memory_space<vmem>>, %arg13: memref<1x128xf32, #tpu.memory_space<vmem>>) attributes {dimension_semantics = [#tpu.dimension_semantics<parallel>, #tpu.dimension_semantics<arbitrary>], iteration_bounds = array<i64: 1, 1>, scalar_prefetch = 0 : i64, scratch_operands = 3 : i64, tpu.core_type = #tpu.core_type<tc>, window_params = [{transform_indices = @transform_0, window_bounds = array<i64: 128, 128>}, {transform_indices = @transform_1, window_bounds = array<i64: 128, 128>}, {transform_indices = @transform_2, window_bounds = array<i64: 128, 128>}, {transform_indices = @transform_3, window_bounds = array<i64: 128, 128>}, {transform_indices = @transform_4, window_bounds = array<i64: 128, 1>}, {transform_indices = @transform_5, window_bounds = array<i64: 1, 128>}, {transform_indices = @transform_6, window_bounds = array<i64: 128, 1>}, {transform_indices = @transform_7, window_bounds = array<i64: 1, 128>}, {transform_indices = @transform_8, window_bounds = array<i64: 1, 8, 128>}]} {
    %c0_i32 = arith.constant 0 : i32
    %0 = arith.cmpi eq, %arg1, %c0_i32 : i32
    %1 = arith.extui %0 : i1 to i32
    %c0_i32_0 = arith.constant 0 : i32
    %2 = arith.cmpi ne, %1, %c0_i32_0 : i32
    scf.if %2 {
      %cst_21 = arith.constant 0.000000e+00 : f32
      %40 = vector.broadcast %cst_21 : f32 to vector<1x128xf32>
      %c0_22 = arith.constant 0 : index
      %c0_23 = arith.constant 0 : index
      %41 = vector.load %arg11[%c0_22, %c0_23] : memref<1x128xf32, #tpu.memory_space<vmem>>, vector<1x128xf32>
      tpu.vector_store %arg11[%c0_22, %c0_23], %40 {strides = array<i32>} : memref<1x128xf32, #tpu.memory_space<vmem>>, vector<1x128xf32>,
      %cst_24 = arith.constant 0.000000e+00 : f32
      %42 = vector.broadcast %cst_24 : f32 to vector<1x128xf32>
      %c0_25 = arith.constant 0 : index
      %c0_26 = arith.constant 0 : index
      %43 = vector.load %arg12[%c0_25, %c0_26] : memref<1x128xf32, #tpu.memory_space<vmem>>, vector<1x128xf32>
      tpu.vector_store %arg12[%c0_25, %c0_26], %42 {strides = array<i32>} : memref<1x128xf32, #tpu.memory_space<vmem>>, vector<1x128xf32>,
      %cst_27 = arith.constant 0.000000e+00 : f32
      %44 = vector.broadcast %cst_27 : f32 to vector<1x128xf32>
      %c0_28 = arith.constant 0 : index
      %c0_29 = arith.constant 0 : index
      %45 = vector.load %arg13[%c0_28, %c0_29] : memref<1x128xf32, #tpu.memory_space<vmem>>, vector<1x128xf32>
      tpu.vector_store %arg13[%c0_28, %c0_29], %44 {strides = array<i32>} : memref<1x128xf32, #tpu.memory_space<vmem>>, vector<1x128xf32>,
    } else {
    }
    %c0 = arith.constant 0 : index
    %c0_1 = arith.constant 0 : index
    %3 = vector.load %arg13[%c0, %c0_1] : memref<1x128xf32, #tpu.memory_space<vmem>>, vector<1x128xf32>
    %c0_2 = arith.constant 0 : index
    %c0_3 = arith.constant 0 : index
    %4 = vector.load %arg2[%c0_2, %c0_3] : memref<128x128xf32, #tpu.memory_space<vmem>>, vector<128x128xf32>
    %c0_4 = arith.constant 0 : index
    %c0_5 = arith.constant 0 : index
    %5 = vector.load %arg5[%c0_4, %c0_5] : memref<128x128xf32, #tpu.memory_space<vmem>>, vector<128x128xf32>
    %cst = arith.constant dense<0.000000e+00> : vector<128x128xf32>
    %6 = tpu.matmul %4, %5, %cst {dimension_numbers = #tpu.dot_dimension_numbers<[1], [1], [0], [0], [0, 0, 1, 0], [], []>} : vector<128x128xf32>, vector<128x128xf32>, vector<128x128xf32> -> vector<128x128xf32>
    %c0_6 = arith.constant 0 : index
    %c0_7 = arith.constant 0 : index
    %7 = vector.load %arg6[%c0_6, %c0_7] : memref<128x1xf32, #tpu.memory_space<vmem>>, vector<128x1xf32>
    %c0_8 = arith.constant 0 : index
    %c0_9 = arith.constant 0 : index
    %8 = vector.load %arg9[%c0_8, %c0_9] : memref<1x128xf32, #tpu.memory_space<vmem>>, vector<1x128xf32>
    %9 = vector.broadcast %7 : vector<128x1xf32> to vector<128x128xf32>
    %10 = vector.broadcast %8 : vector<1x128xf32> to vector<128x128xf32>
    %11 = arith.addf %9, %10 : vector<128x128xf32>
    %cst_10 = arith.constant 2.000000e+00 : f32
    %12 = vector.broadcast %cst_10 : f32 to vector<128x128xf32>
    %13 = arith.mulf %12, %6 : vector<128x128xf32>
    %14 = arith.subf %11, %13 : vector<128x128xf32>
    %cst_11 = arith.constant 0.000000e+00 : f32
    %15 = vector.broadcast %cst_11 : f32 to vector<128x128xf32>
    %16 = arith.maximumf %14, %15 : vector<128x128xf32>
    %cst_12 = arith.constant -5.000000e-03 : f32
    %17 = vector.broadcast %cst_12 : f32 to vector<128x128xf32>
    %18 = arith.mulf %16, %17 : vector<128x128xf32>
    %19 = math.exp %18 : vector<128x128xf32>
    %20 = arith.mulf %19, %19 : vector<128x128xf32>
    %cst_13 = arith.constant -5.000000e-01 : f32
    %21 = vector.broadcast %cst_13 : f32 to vector<128x128xf32>
    %22 = arith.mulf %16, %21 : vector<128x128xf32>
    %23 = math.exp %22 : vector<128x128xf32>
    %24 = arith.mulf %20, %20 : vector<128x128xf32>
    %25 = arith.addf %23, %24 : vector<128x128xf32>
    %26 = arith.addf %25, %19 : vector<128x128xf32>
    %cst_14 = arith.constant dense<0.000000e+00> : vector<128xf32>
    %27 = vector.multi_reduction <add>, %26, %cst_14 [0] : vector<128x128xf32> to vector<128xf32>
    %28 = vector.shape_cast %27 : vector<128xf32> to vector<1x128xf32>
    %29 = arith.addf %3, %28 : vector<1x128xf32>
    %c0_15 = arith.constant 0 : index
    %c0_16 = arith.constant 0 : index
    %30 = vector.load %arg13[%c0_15, %c0_16] : memref<1x128xf32, #tpu.memory_space<vmem>>, vector<1x128xf32>
    tpu.vector_store %arg13[%c0_15, %c0_16], %29 {strides = array<i32>} : memref<1x128xf32, #tpu.memory_space<vmem>>, vector<1x128xf32>,
    %31 = arith.cmpi sge, %arg1, %arg0 : i32
    %32 = arith.extui %31 : i1 to i32
    %c0_i32_17 = arith.constant 0 : i32
    %33 = arith.cmpi ne, %32, %c0_i32_17 : i32
    scf.if %33 {
      %40 = arith.cmpi sgt, %arg1, %arg0 : i32
      %cst_21 = arith.constant 2.000000e+00 : f32
      %cst_22 = arith.constant 1.000000e+00 : f32
      %41 = arith.select %40, %cst_21, %cst_22 : f32
      %c0_23 = arith.constant 0 : index
      %c0_24 = arith.constant 0 : index
      %42 = vector.load %arg11[%c0_23, %c0_24] : memref<1x128xf32, #tpu.memory_space<vmem>>, vector<1x128xf32>
      %c0_25 = arith.constant 0 : index
      %c0_26 = arith.constant 0 : index
      %43 = vector.load %arg2[%c0_25, %c0_26] : memref<128x128xf32, #tpu.memory_space<vmem>>, vector<128x128xf32>
      %c0_27 = arith.constant 0 : index
      %c0_28 = arith.constant 0 : index
      %44 = vector.load %arg3[%c0_27, %c0_28] : memref<128x128xf32, #tpu.memory_space<vmem>>, vector<128x128xf32>
      %cst_29 = arith.constant dense<0.000000e+00> : vector<128x128xf32>
      %45 = tpu.matmul %43, %44, %cst_29 {dimension_numbers = #tpu.dot_dimension_numbers<[1], [1], [0], [0], [0, 0, 1, 0], [], []>} : vector<128x128xf32>, vector<128x128xf32>, vector<128x128xf32> -> vector<128x128xf32>
      %c0_30 = arith.constant 0 : index
      %c0_31 = arith.constant 0 : index
      %46 = vector.load %arg6[%c0_30, %c0_31] : memref<128x1xf32, #tpu.memory_space<vmem>>, vector<128x1xf32>
      %c0_32 = arith.constant 0 : index
      %c0_33 = arith.constant 0 : index
      %47 = vector.load %arg7[%c0_32, %c0_33] : memref<1x128xf32, #tpu.memory_space<vmem>>, vector<1x128xf32>
      %48 = vector.broadcast %46 : vector<128x1xf32> to vector<128x128xf32>
      %49 = vector.broadcast %47 : vector<1x128xf32> to vector<128x128xf32>
      %50 = arith.addf %48, %49 : vector<128x128xf32>
      %cst_34 = arith.constant 2.000000e+00 : f32
      %51 = vector.broadcast %cst_34 : f32 to vector<128x128xf32>
      %52 = arith.mulf %51, %45 : vector<128x128xf32>
      %53 = arith.subf %50, %52 : vector<128x128xf32>
      %cst_35 = arith.constant 0.000000e+00 : f32
      %54 = vector.broadcast %cst_35 : f32 to vector<128x128xf32>
      %55 = arith.maximumf %53, %54 : vector<128x128xf32>
      %cst_36 = arith.constant -5.000000e-03 : f32
      %56 = vector.broadcast %cst_36 : f32 to vector<128x128xf32>
      %57 = arith.mulf %55, %56 : vector<128x128xf32>
      %58 = math.exp %57 : vector<128x128xf32>
      %59 = arith.mulf %58, %58 : vector<128x128xf32>
      %cst_37 = arith.constant -5.000000e-01 : f32
      %60 = vector.broadcast %cst_37 : f32 to vector<128x128xf32>
      %61 = arith.mulf %55, %60 : vector<128x128xf32>
      %62 = math.exp %61 : vector<128x128xf32>
      %63 = arith.mulf %59, %59 : vector<128x128xf32>
      %64 = arith.addf %62, %63 : vector<128x128xf32>
      %65 = arith.addf %64, %58 : vector<128x128xf32>
      %cst_38 = arith.constant dense<0.000000e+00> : vector<128xf32>
      %66 = vector.multi_reduction <add>, %65, %cst_38 [0] : vector<128x128xf32> to vector<128xf32>
      %67 = vector.shape_cast %66 : vector<128xf32> to vector<1x128xf32>
      %68 = vector.broadcast %41 : f32 to vector<1x128xf32>
      %69 = arith.mulf %68, %67 : vector<1x128xf32>
      %70 = arith.addf %42, %69 : vector<1x128xf32>
      %c0_39 = arith.constant 0 : index
      %c0_40 = arith.constant 0 : index
      %71 = vector.load %arg11[%c0_39, %c0_40] : memref<1x128xf32, #tpu.memory_space<vmem>>, vector<1x128xf32>
      tpu.vector_store %arg11[%c0_39, %c0_40], %70 {strides = array<i32>} : memref<1x128xf32, #tpu.memory_space<vmem>>, vector<1x128xf32>,
    } else {
    }
    %34 = arith.cmpi sge, %arg1, %arg0 : i32
    %35 = arith.extui %34 : i1 to i32
    %c0_i32_18 = arith.constant 0 : i32
    %36 = arith.cmpi ne, %35, %c0_i32_18 : i32
    scf.if %36 {
      %40 = arith.cmpi sgt, %arg1, %arg0 : i32
      %cst_21 = arith.constant 2.000000e+00 : f32
      %cst_22 = arith.constant 1.000000e+00 : f32
      %41 = arith.select %40, %cst_21, %cst_22 : f32
      %c0_23 = arith.constant 0 : index
      %c0_24 = arith.constant 0 : index
      %42 = vector.load %arg12[%c0_23, %c0_24] : memref<1x128xf32, #tpu.memory_space<vmem>>, vector<1x128xf32>
      %c0_25 = arith.constant 0 : index
      %c0_26 = arith.constant 0 : index
      %43 = vector.load %arg4[%c0_25, %c0_26] : memref<128x128xf32, #tpu.memory_space<vmem>>, vector<128x128xf32>
      %c0_27 = arith.constant 0 : index
      %c0_28 = arith.constant 0 : index
      %44 = vector.load %arg5[%c0_27, %c0_28] : memref<128x128xf32, #tpu.memory_space<vmem>>, vector<128x128xf32>
      %cst_29 = arith.constant dense<0.000000e+00> : vector<128x128xf32>
      %45 = tpu.matmul %43, %44, %cst_29 {dimension_numbers = #tpu.dot_dimension_numbers<[1], [1], [0], [0], [0, 0, 1, 0], [], []>} : vector<128x128xf32>, vector<128x128xf32>, vector<128x128xf32> -> vector<128x128xf32>
      %c0_30 = arith.constant 0 : index
      %c0_31 = arith.constant 0 : index
      %46 = vector.load %arg8[%c0_30, %c0_31] : memref<128x1xf32, #tpu.memory_space<vmem>>, vector<128x1xf32>
      %c0_32 = arith.constant 0 : index
      %c0_33 = arith.constant 0 : index
      %47 = vector.load %arg9[%c0_32, %c0_33] : memref<1x128xf32, #tpu.memory_space<vmem>>, vector<1x128xf32>
      %48 = vector.broadcast %46 : vector<128x1xf32> to vector<128x128xf32>
      %49 = vector.broadcast %47 : vector<1x128xf32> to vector<128x128xf32>
      %50 = arith.addf %48, %49 : vector<128x128xf32>
      %cst_34 = arith.constant 2.000000e+00 : f32
      %51 = vector.broadcast %cst_34 : f32 to vector<128x128xf32>
      %52 = arith.mulf %51, %45 : vector<128x128xf32>
      %53 = arith.subf %50, %52 : vector<128x128xf32>
      %cst_35 = arith.constant 0.000000e+00 : f32
      %54 = vector.broadcast %cst_35 : f32 to vector<128x128xf32>
      %55 = arith.maximumf %53, %54 : vector<128x128xf32>
      %cst_36 = arith.constant -5.000000e-03 : f32
      %56 = vector.broadcast %cst_36 : f32 to vector<128x128xf32>
      %57 = arith.mulf %55, %56 : vector<128x128xf32>
      %58 = math.exp %57 : vector<128x128xf32>
      %59 = arith.mulf %58, %58 : vector<128x128xf32>
      %cst_37 = arith.constant -5.000000e-01 : f32
      %60 = vector.broadcast %cst_37 : f32 to vector<128x128xf32>
      %61 = arith.mulf %55, %60 : vector<128x128xf32>
      %62 = math.exp %61 : vector<128x128xf32>
      %63 = arith.mulf %59, %59 : vector<128x128xf32>
      %64 = arith.addf %62, %63 : vector<128x128xf32>
      %65 = arith.addf %64, %58 : vector<128x128xf32>
      %cst_38 = arith.constant dense<0.000000e+00> : vector<128xf32>
      %66 = vector.multi_reduction <add>, %65, %cst_38 [0] : vector<128x128xf32> to vector<128xf32>
      %67 = vector.shape_cast %66 : vector<128xf32> to vector<1x128xf32>
      %68 = vector.broadcast %41 : f32 to vector<1x128xf32>
      %69 = arith.mulf %68, %67 : vector<1x128xf32>
      %70 = arith.addf %42, %69 : vector<1x128xf32>
      %c0_39 = arith.constant 0 : index
      %c0_40 = arith.constant 0 : index
      %71 = vector.load %arg12[%c0_39, %c0_40] : memref<1x128xf32, #tpu.memory_space<vmem>>, vector<1x128xf32>
      tpu.vector_store %arg12[%c0_39, %c0_40], %70 {strides = array<i32>} : memref<1x128xf32, #tpu.memory_space<vmem>>, vector<1x128xf32>,
    } else {
    }
    %c0_i32_19 = arith.constant 0 : i32
    %37 = arith.cmpi eq, %arg1, %c0_i32_19 : i32
    %38 = arith.extui %37 : i1 to i32
    %c0_i32_20 = arith.constant 0 : i32
    %39 = arith.cmpi ne, %38, %c0_i32_20 : i32
    scf.if %39 {
      %40 = tpu.iota {dimensions = array<i32: 0>} : vector<8x128xi32>
      %c0_i32_21 = arith.constant 0 : i32
      %41 = vector.broadcast %c0_i32_21 : i32 to vector<8x128xi32>
      %42 = arith.cmpi eq, %40, %41 : vector<8x128xi32>
      %c0_22 = arith.constant 0 : index
      %c0_23 = arith.constant 0 : index
      %43 = vector.load %arg11[%c0_22, %c0_23] : memref<1x128xf32, #tpu.memory_space<vmem>>, vector<1x128xf32>
      %c1_i32 = arith.constant 1 : i32
      %44 = vector.broadcast %c1_i32 : i32 to vector<8x128xi32>
      %45 = arith.cmpi eq, %40, %44 : vector<8x128xi32>
      %c0_24 = arith.constant 0 : index
      %c0_25 = arith.constant 0 : index
      %46 = vector.load %arg12[%c0_24, %c0_25] : memref<1x128xf32, #tpu.memory_space<vmem>>, vector<1x128xf32>
      %c2_i32 = arith.constant 2 : i32
      %47 = vector.broadcast %c2_i32 : i32 to vector<8x128xi32>
      %48 = arith.cmpi eq, %40, %47 : vector<8x128xi32>
      %c0_26 = arith.constant 0 : index
      %c0_27 = arith.constant 0 : index
      %49 = vector.load %arg13[%c0_26, %c0_27] : memref<1x128xf32, #tpu.memory_space<vmem>>, vector<1x128xf32>
      %cst_28 = arith.constant 0.000000e+00 : f32
      %50 = vector.shape_cast %49 : vector<1x128xf32> to vector<1x128xf32>
      %51 = vector.broadcast %50 : vector<1x128xf32> to vector<8x128xf32>
      %52 = vector.broadcast %cst_28 : f32 to vector<8x128xf32>
      %53 = arith.select %48, %51, %52 : vector<8x128xi1>, vector<8x128xf32>
      %54 = vector.shape_cast %46 : vector<1x128xf32> to vector<1x128xf32>
      %55 = vector.broadcast %54 : vector<1x128xf32> to vector<8x128xf32>
      %56 = arith.select %45, %55, %53 : vector<8x128xi1>, vector<8x128xf32>
      %57 = vector.shape_cast %43 : vector<1x128xf32> to vector<1x128xf32>
      %58 = vector.broadcast %57 : vector<1x128xf32> to vector<8x128xf32>
      %59 = arith.select %42, %58, %56 : vector<8x128xi1>, vector<8x128xf32>
      %c0_29 = arith.constant 0 : index
      %c0_30 = arith.constant 0 : index
      %c0_31 = arith.constant 0 : index
      %60 = vector.load %arg10[%c0_29, %c0_30, %c0_31] : memref<1x8x128xf32, #tpu.memory_space<vmem>>, vector<1x8x128xf32>
      %61 = vector.shape_cast %60 : vector<1x8x128xf32> to vector<8x128xf32>
      %62 = vector.shape_cast %59 : vector<8x128xf32> to vector<1x8x128xf32>
      tpu.vector_store %arg10[%c0_29, %c0_30, %c0_31], %62 {strides = array<i32>} : memref<1x8x128xf32, #tpu.memory_space<vmem>>, vector<1x8x128xf32>,
    } else {
    }
    return
  }
  func.func @transform_0(%arg0: i32, %arg1: i32) -> (i32, i32) {
    %c0_i32 = arith.constant 0 : i32
    %c0_i32_0 = arith.constant 0 : i32
    return %arg0, %c0_i32 : i32, i32
  }
  func.func @transform_1(%arg0: i32, %arg1: i32) -> (i32, i32) {
    %c0_i32 = arith.constant 0 : i32
    %c0_i32_0 = arith.constant 0 : i32
    return %arg1, %c0_i32 : i32, i32
  }
  func.func @transform_2(%arg0: i32, %arg1: i32) -> (i32, i32) {
    %c0_i32 = arith.constant 0 : i32
    %c0_i32_0 = arith.constant 0 : i32
    return %arg0, %c0_i32 : i32, i32
  }
  func.func @transform_3(%arg0: i32, %arg1: i32) -> (i32, i32) {
    %c0_i32 = arith.constant 0 : i32
    %c0_i32_0 = arith.constant 0 : i32
    return %arg1, %c0_i32 : i32, i32
  }
  func.func @transform_4(%arg0: i32, %arg1: i32) -> (i32, i32) {
    %c0_i32 = arith.constant 0 : i32
    %c0_i32_0 = arith.constant 0 : i32
    return %arg0, %c0_i32 : i32, i32
  }
  func.func @transform_5(%arg0: i32, %arg1: i32) -> (i32, i32) {
    %c0_i32 = arith.constant 0 : i32
    %c0_i32_0 = arith.constant 0 : i32
    return %c0_i32, %arg1 : i32, i32
  }
  func.func @transform_6(%arg0: i32, %arg1: i32) -> (i32, i32) {
    %c0_i32 = arith.constant 0 : i32
    %c0_i32_0 = arith.constant 0 : i32
    return %arg0, %c0_i32 : i32, i32
  }
  func.func @transform_7(%arg0: i32, %arg1: i32) -> (i32, i32) {
    %c0_i32 = arith.constant 0 : i32
    %c0_i32_0 = arith.constant 0 : i32
    return %c0_i32, %arg1 : i32, i32
  }
  func.func @transform_8(%arg0: i32, %arg1: i32) -> (i32, i32, i32) {
    %c0_i32 = arith.constant 0 : i32
    %c0_i32_0 = arith.constant 0 : i32
    %c0_i32_1 = arith.constant 0 : i32
    return %arg0, %c0_i32, %c0_i32_0 : i32, i32, i32
  }
}

</mosaic_0001>

<llo_original>
// kernel: tpu_custom_call.1
$region0: #{tpu_custom_call.1}
  #allocation0 [shape = 'u32[]', space=smem, size = 0x4, offset = 0x4, fixed_abs, tag = 'smem constant byte address 0x4 - core index']
  #allocation1 [shape = 'u32[144,128]{1,0:T(1,128)}', space=vmem, size = 0x12000, scoped, tag = 'internal scratch']
  #allocation2 [shape = 'f32[1,128]{1,0:T(1,128)}', space=vmem, size = 0x200, scoped, tag = 'scratch operand']
  #allocation3 [shape = 'f32[1,128]{1,0:T(1,128)}', space=vmem, size = 0x200, scoped, tag = 'scratch operand']
  #allocation4 [shape = 'f32[1,128]{1,0:T(1,128)}', space=vmem, size = 0x200, scoped, tag = 'scratch operand']
  %s0 = inlined_call_operand.vmem [shape: f32[128,128], index: 0, kind: input, shape index: {}]
  %s1 = inlined_call_operand.vmem [shape: f32[128,128], index: 1, kind: input, shape index: {}]
  %s2 = inlined_call_operand.hbm [shape: f32[128,128], index: 2, kind: input, shape index: {}]
  %s3 = inlined_call_operand.hbm [shape: f32[128,128], index: 3, kind: input, shape index: {}]
  %s4 = inlined_call_operand.vmem [shape: f32[128,1], index: 4, kind: input, shape index: {}]
  %s5 = inlined_call_operand.vmem [shape: f32[1,128], index: 5, kind: input, shape index: {}]
  %s6 = inlined_call_operand.vmem [shape: f32[128,1], index: 6, kind: input, shape index: {}]
  %s7 = inlined_call_operand.vmem [shape: f32[1,128], index: 7, kind: input, shape index: {}]
  %s8 = inlined_call_operand.hbm [shape: f32[1,8,128], index: 8, kind: output, shape index: {}]
  %s9 = sld [smem:[#allocation0]]
  $region62: #{tpu_custom_call.1} parent=0
    _
  %s11 = ssub.s32 1, %s9
  %s12 = scalar_select 0, %s11, %s9
  $region1: #{tpu_custom_call.1} parent=0
    #allocation5 [shape = 'u8[65536]{0}', space=vmem, size = 0x10000, scoped, tag = 'input window, operand 2, single buffered']
    #allocation6 [shape = 's32[1]{0}', space=sflag, size = 0x4, scoped, tag = 'scoped memory for tpu_custom_call.1']
    #allocation7 [shape = 's32[1]{0}', space=sflag, size = 0x4, scoped, tag = 'scoped memory for tpu_custom_call.1']
    #allocation8 [shape = 'u8[65536]{0}', space=vmem, size = 0x10000, scoped, tag = 'input window, operand 3, single buffered']
    #allocation9 [shape = 's32[1]{0}', space=sflag, size = 0x4, scoped, tag = 'scoped memory for tpu_custom_call.1']
    #allocation10 [shape = 'u8[4096]{0}', space=vmem, size = 0x1000, scoped, tag = 'output window, operand 0, single buffered']
    %13 = vsyncpa [#allocation6], 0
    %14 = vsyncpa [#allocation9], 0
    %15 = vsyncpa [#allocation7], 0
    // Predicated region
    $region2: #{tpu_custom_call.1} parent=1 // pred_check
      _
    $region3: #{tpu_custom_call.1} parent=1 // pred_check_branch
      %17 = sbr.rel (0) target = $region5
    $region4: #{tpu_custom_call.1} parent=1 // pred_region
      _
    $region5: #{tpu_custom_call.1} parent=1 // pred_fallthru
      _
    // Predicated region
    $region6: #{tpu_custom_call.1} parent=1 // pred_check
      _
    $region7: #{tpu_custom_call.1} parent=1 // pred_check_branch
      %19 = sbr.rel (0) target = $region9
    $region8: #{tpu_custom_call.1} parent=1 // pred_region
      _
    $region9: #{tpu_custom_call.1} parent=1 // pred_fallthru
      _
    // Predicated region
    $region10: #{tpu_custom_call.1} parent=1 // pred_check
      _
    $region11: #{tpu_custom_call.1} parent=1 // pred_check_branch
      %21 = sbr.rel (0) target = $region13
    $region12: #{tpu_custom_call.1} parent=1 // pred_region
      %s23 = ssub.s32 2048, 2048
      %24 = vsyncadd [#allocation6], %s23
      %s25 = sshll.u32 [#allocation5], 4
      %s26 = int_to_ptr.vmem [resolvable:$true] %s25
      %31 = dma.hbm_to_vmem [thread:$0]  %s2, 2048, %s26, [#allocation6], 128, 128, 8
    $region13: #{tpu_custom_call.1} parent=1 // pred_fallthru
      _
    // Predicated region
    $region14: #{tpu_custom_call.1} parent=1 // pred_check
      _
    $region15: #{tpu_custom_call.1} parent=1 // pred_check_branch
      %33 = sbr.rel (0) target = $region17
    $region16: #{tpu_custom_call.1} parent=1 // pred_region
      %s35 = ssub.s32 2048, 2048
      %36 = vsyncadd [#allocation9], %s35
      %s37 = sshll.u32 [#allocation8], 4
      %s38 = int_to_ptr.vmem [resolvable:$true] %s37
      %43 = dma.hbm_to_vmem [thread:$0]  %s3, 2048, %s38, [#allocation9], 128, 128, 8
    $region17: #{tpu_custom_call.1} parent=1 // pred_fallthru
      _
    // Predicated region
    $region18: #{tpu_custom_call.1} parent=1 // pred_check
      _
    $region19: #{tpu_custom_call.1} parent=1 // pred_check_branch
      %45 = sbr.rel (0) target = $region21
    $region20: #{tpu_custom_call.1} parent=1 // pred_region
      _
    $region21: #{tpu_custom_call.1} parent=1 // pred_fallthru
      _
    // Predicated region
    $region22: #{tpu_custom_call.1} parent=1 // pred_check
      _
    $region23: #{tpu_custom_call.1} parent=1 // pred_check_branch
      %47 = sbr.rel (0) target = $region25
    $region24: #{tpu_custom_call.1} parent=1 // pred_region
      _
    $region25: #{tpu_custom_call.1} parent=1 // pred_fallthru
      _
    // Predicated region
    $region26: #{tpu_custom_call.1} parent=1 // pred_check
      _
    $region27: #{tpu_custom_call.1} parent=1 // pred_check_branch
      %49 = sbr.rel (0) target = $region29
    $region28: #{tpu_custom_call.1} parent=1 // pred_region
      _
    $region29: #{tpu_custom_call.1} parent=1 // pred_fallthru
      _
    // Predicated region
    $region30: #{tpu_custom_call.1} parent=1 // pred_check
      _
    $region31: #{tpu_custom_call.1} parent=1 // pred_check_branch
      %51 = sbr.rel (0) target = $region33
    $region32: #{tpu_custom_call.1} parent=1 // pred_region
      _
    $region33: #{tpu_custom_call.1} parent=1 // pred_fallthru
      _
    // Predicated region
    $region34: #{tpu_custom_call.1} parent=1 // pred_check
      _
    $region35: #{tpu_custom_call.1} parent=1 // pred_check_branch
      %53 = sbr.rel (0) target = $region37
    $region36: #{tpu_custom_call.1} parent=1 // pred_region
      %54 = dma.done [#allocation6], 2048
    $region37: #{tpu_custom_call.1} parent=1 // pred_fallthru
      _
    // Predicated region
    $region38: #{tpu_custom_call.1} parent=1 // pred_check
      _
    $region39: #{tpu_custom_call.1} parent=1 // pred_check_branch
      %56 = sbr.rel (0) target = $region41
    $region40: #{tpu_custom_call.1} parent=1 // pred_region
      %57 = dma.done [#allocation9], 2048
    $region41: #{tpu_custom_call.1} parent=1 // pred_fallthru
      _
    %p58 = scmp.eq.s32.totalorder 0, 0
    // Predicated region
    $region42: #{tpu_custom_call.1} parent=1 // pred_check
      %p59 = pneg %p58
    $region43: #{tpu_custom_call.1} parent=1 // pred_check_branch
      %61 = sbr.rel (%p59) target = $region45
    $region44: #{tpu_custom_call.1} parent=1 // pred_region
      %62 = vst [vmem:[#allocation2] sm:$0x1] 0.0
      %63 = vst [vmem:[#allocation3] sm:$0x1] 0.0
      %64 = vst [vmem:[#allocation4] sm:$0x1] 0.0
    $region45: #{tpu_custom_call.1} parent=1 // pred_fallthru
      _
    %v65 = vld [vmem:[#allocation4] sm:$0x1]
    %v66 = vld [vmem:[%s0] sm:$0xff]
    %v67 = vld [vmem:[%s0 + $0x8] sm:$0xff]
    %v68 = vld [vmem:[%s0 + $0x10] sm:$0xff]
    %v69 = vld [vmem:[%s0 + $0x18] sm:$0xff]
    %v70 = vld [vmem:[%s0 + $0x20] sm:$0xff]
    %v71 = vld [vmem:[%s0 + $0x28] sm:$0xff]
    %v72 = vld [vmem:[%s0 + $0x30] sm:$0xff]
    %v73 = vld [vmem:[%s0 + $0x38] sm:$0xff]
    %v74 = vld [vmem:[%s0 + $0x40] sm:$0xff]
    %v75 = vld [vmem:[%s0 + $0x48] sm:$0xff]
    %v76 = vld [vmem:[%s0 + $0x50] sm:$0xff]
    %v77 = vld [vmem:[%s0 + $0x58] sm:$0xff]
    %v78 = vld [vmem:[%s0 + $0x60] sm:$0xff]
    %v79 = vld [vmem:[%s0 + $0x68] sm:$0xff]
    %v80 = vld [vmem:[%s0 + $0x70] sm:$0xff]
    %v81 = vld [vmem:[%s0 + $0x78] sm:$0xff]
    %v82 = vld [vmem:[#allocation8] sm:$0xff]
    %v83 = vld [vmem:[#allocation8 + $0x8] sm:$0xff]
    %v84 = vld [vmem:[#allocation8 + $0x10] sm:$0xff]
    %v85 = vld [vmem:[#allocation8 + $0x18] sm:$0xff]
    %v86 = vld [vmem:[#allocation8 + $0x20] sm:$0xff]
    %v87 = vld [vmem:[#allocation8 + $0x28] sm:$0xff]
    %v88 = vld [vmem:[#allocation8 + $0x30] sm:$0xff]
    %v89 = vld [vmem:[#allocation8 + $0x38] sm:$0xff]
    %v90 = vld [vmem:[#allocation8 + $0x40] sm:$0xff]
    %v91 = vld [vmem:[#allocation8 + $0x48] sm:$0xff]
    %v92 = vld [vmem:[#allocation8 + $0x50] sm:$0xff]
    %v93 = vld [vmem:[#allocation8 + $0x58] sm:$0xff]
    %v94 = vld [vmem:[#allocation8 + $0x60] sm:$0xff]
    %v95 = vld [vmem:[#allocation8 + $0x68] sm:$0xff]
    %v96 = vld [vmem:[#allocation8 + $0x70] sm:$0xff]
    %v97 = vld [vmem:[#allocation8 + $0x78] sm:$0xff]
    %98 = vmatprep.subr.mxu0 0.0
    %99 = vmatpush1.xpose.msra.mxu0 %v82
    %100 = vmatprep.subr.mxu0 0.0
    %101 = vmatpush1.xpose.msra.mxu0 %v83
    %102 = vmatprep.subr.mxu0 0.0
    %103 = vmatpush1.xpose.msra.mxu0 %v84
    %104 = vmatprep.subr.mxu0 0.0
    %105 = vmatpush1.xpose.msra.mxu0 %v85
    %106 = vmatprep.subr.mxu0 0.0
    %107 = vmatpush1.xpose.msra.mxu0 %v86
    %108 = vmatprep.subr.mxu0 0.0
    %109 = vmatpush1.xpose.msra.mxu0 %v87
    %110 = vmatprep.subr.mxu0 0.0
    %111 = vmatpush1.xpose.msra.mxu0 %v88
    %112 = vmatprep.subr.mxu0 0.0
    %113 = vmatpush1.xpose.msra.mxu0 %v89
    %114 = vmatprep.subr.mxu0 0.0
    %115 = vmatpush1.xpose.msra.mxu0 %v90
    %116 = vmatprep.subr.mxu0 0.0
    %117 = vmatpush1.xpose.msra.mxu0 %v91
    %118 = vmatprep.subr.mxu0 0.0
    %119 = vmatpush1.xpose.msra.mxu0 %v92
    %120 = vmatprep.subr.mxu0 0.0
    %121 = vmatpush1.xpose.msra.mxu0 %v93
    %122 = vmatprep.subr.mxu0 0.0
    %123 = vmatpush1.xpose.msra.mxu0 %v94
    %124 = vmatprep.subr.mxu0 0.0
    %125 = vmatpush1.xpose.msra.mxu0 %v95
    %126 = vmatprep.subr.mxu0 0.0
    %127 = vmatpush1.xpose.msra.mxu0 %v96
    %128 = vmatprep.subr.mxu0 0.0
    %129 = vmatpush1.xpose.msra.mxu0 %v97
    %130 = vmatprep.subr.mxu0 0.0
    %131 = vmatpush1.xpose.msra.mxu0 0.0
    %132 = vmatprep.subr.mxu0 0.0
    %133 = vmatpush1.xpose.msra.mxu0 0.0
    %134 = vmatprep.subr.mxu0 0.0
    %135 = vmatpush1.xpose.msra.mxu0 0.0
    %136 = vmatprep.subr.mxu0 0.0
    %137 = vmatpush1.xpose.msra.mxu0 0.0
    %138 = vmatprep.subr.mxu0 0.0
    %139 = vmatpush1.xpose.msra.mxu0 0.0
    %140 = vmatprep.subr.mxu0 0.0
    %141 = vmatpush1.xpose.msra.mxu0 0.0
    %142 = vmatprep.subr.mxu0 0.0
    %143 = vmatpush1.xpose.msra.mxu0 0.0
    %144 = vmatprep.subr.mxu0 0.0
    %145 = vmatpush1.xpose.msra.mxu0 0.0
    %146 = vmatprep.subr.mxu0 0.0
    %147 = vmatpush1.xpose.msra.mxu0 0.0
    %148 = vmatprep.subr.mxu0 0.0
    %149 = vmatpush1.xpose.msra.mxu0 0.0
    %150 = vmatprep.subr.mxu0 0.0
    %151 = vmatpush1.xpose.msra.mxu0 0.0
    %152 = vmatprep.subr.mxu0 0.0
    %153 = vmatpush1.xpose.msra.mxu0 0.0
    %154 = vmatprep.subr.mxu0 0.0
    %155 = vmatpush1.xpose.msra.mxu0 0.0
    %156 = vmatprep.subr.mxu0 0.0
    %157 = vmatpush1.xpose.msra.mxu0 0.0
    %158 = vmatprep.subr.mxu0 0.0
    %159 = vmatpush1.xpose.msra.mxu0 0.0
    %160 = vmatprep.subr.mxu0 0.0
    %161 = vmatpush1.xpose.msra.mxu0 0.0
    %162 = vmatprep.mubr.f32.mxu0 0.0
    %163 = vmatmul.mubr.f32.gmra.mrb[0].mxu0 %v66
    %v164 = vpop.f32.mrb[0].mxu0
    %v165 = vadd.f32 0.0, %v164
    %v166 = vpop.f32.mrb[0].mxu0
    %167 = vmatprep.mubr.f32.mxu0 0.0
    %168 = vmatmul.mubr.f32.gmra.mrb[0].mxu0 %v67
    %v169 = vpop.f32.mrb[0].mxu0
    %v170 = vadd.f32 0.0, %v169
    %v171 = vpop.f32.mrb[0].mxu0
    %172 = vmatprep.mubr.f32.mxu0 0.0
    %173 = vmatmul.mubr.f32.gmra.mrb[0].mxu0 %v68
    %v174 = vpop.f32.mrb[0].mxu0
    %v175 = vadd.f32 0.0, %v174
    %v176 = vpop.f32.mrb[0].mxu0
    %177 = vmatprep.mubr.f32.mxu0 0.0
    %178 = vmatmul.mubr.f32.gmra.mrb[0].mxu0 %v69
    %v179 = vpop.f32.mrb[0].mxu0
    %v180 = vadd.f32 0.0, %v179
    %v181 = vpop.f32.mrb[0].mxu0
    %182 = vmatprep.mubr.f32.mxu0 0.0
    %183 = vmatmul.mubr.f32.gmra.mrb[0].mxu0 %v70
    %v184 = vpop.f32.mrb[0].mxu0
    %v185 = vadd.f32 0.0, %v184
    %v186 = vpop.f32.mrb[0].mxu0
    %187 = vmatprep.mubr.f32.mxu0 0.0
    %188 = vmatmul.mubr.f32.gmra.mrb[0].mxu0 %v71
    %v189 = vpop.f32.mrb[0].mxu0
    %v190 = vadd.f32 0.0, %v189
    %v191 = vpop.f32.mrb[0].mxu0
    %192 = vmatprep.mubr.f32.mxu0 0.0
    %193 = vmatmul.mubr.f32.gmra.mrb[0].mxu0 %v72
    %v194 = vpop.f32.mrb[0].mxu0
    %v195 = vadd.f32 0.0, %v194
    %v196 = vpop.f32.mrb[0].mxu0
    %197 = vmatprep.mubr.f32.mxu0 0.0
    %198 = vmatmul.mubr.f32.gmra.mrb[0].mxu0 %v73
    %v199 = vpop.f32.mrb[0].mxu0
    %v200 = vadd.f32 0.0, %v199
    %v201 = vpop.f32.mrb[0].mxu0
    %202 = vmatprep.mubr.f32.mxu0 0.0
    %203 = vmatmul.mubr.f32.gmra.mrb[0].mxu0 %v74
    %v204 = vpop.f32.mrb[0].mxu0
    %v205 = vadd.f32 0.0, %v204
    %v206 = vpop.f32.mrb[0].mxu0
    %207 = vmatprep.mubr.f32.mxu0 0.0
    %208 = vmatmul.mubr.f32.gmra.mrb[0].mxu0 %v75
    %v209 = vpop.f32.mrb[0].mxu0
    %v210 = vadd.f32 0.0, %v209
    %v211 = vpop.f32.mrb[0].mxu0
    %212 = vmatprep.mubr.f32.mxu0 0.0
    %213 = vmatmul.mubr.f32.gmra.mrb[0].mxu0 %v76
    %v214 = vpop.f32.mrb[0].mxu0
    %v215 = vadd.f32 0.0, %v214
    %v216 = vpop.f32.mrb[0].mxu0
    %217 = vmatprep.mubr.f32.mxu0 0.0
    %218 = vmatmul.mubr.f32.gmra.mrb[0].mxu0 %v77
    %v219 = vpop.f32.mrb[0].mxu0
    %v220 = vadd.f32 0.0, %v219
    %v221 = vpop.f32.mrb[0].mxu0
    %222 = vmatprep.mubr.f32.mxu0 0.0
    %223 = vmatmul.mubr.f32.gmra.mrb[0].mxu0 %v78
    %v224 = vpop.f32.mrb[0].mxu0
    %v225 = vadd.f32 0.0, %v224
    %v226 = vpop.f32.mrb[0].mxu0
    %227 = vmatprep.mubr.f32.mxu0 0.0
    %228 = vmatmul.mubr.f32.gmra.mrb[0].mxu0 %v79
    %v229 = vpop.f32.mrb[0].mxu0
    %v230 = vadd.f32 0.0, %v229
    %v231 = vpop.f32.mrb[0].mxu0
    %232 = vmatprep.mubr.f32.mxu0 0.0
    %233 = vmatmul.mubr.f32.gmra.mrb[0].mxu0 %v80
    %v234 = vpop.f32.mrb[0].mxu0
    %v235 = vadd.f32 0.0, %v234
    %v236 = vpop.f32.mrb[0].mxu0
    %237 = vmatprep.mubr.f32.mxu0 0.0
    %238 = vmatmul.mubr.f32.gmra.mrb[0].mxu0 %v81
    %v239 = vpop.f32.mrb[0].mxu0
    %v240 = vadd.f32 0.0, %v239
    %v241 = vpop.f32.mrb[0].mxu0
    %242 = vdwg.mxu0
    %v243 = vld [vmem:[%s4] sm:$0xff]
    %v244 = vld [vmem:[%s4 + $0x8] sm:$0xff]
    %v245 = vld [vmem:[%s4 + $0x10] sm:$0xff]
    %v246 = vld [vmem:[%s4 + $0x18] sm:$0xff]
    %v247 = vld [vmem:[%s4 + $0x20] sm:$0xff]
    %v248 = vld [vmem:[%s4 + $0x28] sm:$0xff]
    %v249 = vld [vmem:[%s4 + $0x30] sm:$0xff]
    %v250 = vld [vmem:[%s4 + $0x38] sm:$0xff]
    %v251 = vld [vmem:[%s4 + $0x40] sm:$0xff]
    %v252 = vld [vmem:[%s4 + $0x48] sm:$0xff]
    %v253 = vld [vmem:[%s4 + $0x50] sm:$0xff]
    %v254 = vld [vmem:[%s4 + $0x58] sm:$0xff]
    %v255 = vld [vmem:[%s4 + $0x60] sm:$0xff]
    %v256 = vld [vmem:[%s4 + $0x68] sm:$0xff]
    %v257 = vld [vmem:[%s4 + $0x70] sm:$0xff]
    %v258 = vld [vmem:[%s4 + $0x78] sm:$0xff]
    %v259 = vld [vmem:[%s7] sm:$0x1]
    %261 = vset.pattern.permute.xlu0 0
    %262 = vperm.xlu0 %261, %v243
    %v263 = vpop.permute.xlu0 %262
    %266 = vset.pattern.permute.xlu0 0
    %267 = vperm.xlu0 %266, %v244
    %v268 = vpop.permute.xlu0 %267
    %271 = vset.pattern.permute.xlu0 0
    %272 = vperm.xlu0 %271, %v245
    %v273 = vpop.permute.xlu0 %272
    %276 = vset.pattern.permute.xlu0 0
    %277 = vperm.xlu0 %276, %v246
    %v278 = vpop.permute.xlu0 %277
    %281 = vset.pattern.permute.xlu0 0
    %282 = vperm.xlu0 %281, %v247
    %v283 = vpop.permute.xlu0 %282
    %286 = vset.pattern.permute.xlu0 0
    %287 = vperm.xlu0 %286, %v248
    %v288 = vpop.permute.xlu0 %287
    %291 = vset.pattern.permute.xlu0 0
    %292 = vperm.xlu0 %291, %v249
    %v293 = vpop.permute.xlu0 %292
    %296 = vset.pattern.permute.xlu0 0
    %297 = vperm.xlu0 %296, %v250
    %v298 = vpop.permute.xlu0 %297
    %301 = vset.pattern.permute.xlu0 0
    %302 = vperm.xlu0 %301, %v251
    %v303 = vpop.permute.xlu0 %302
    %306 = vset.pattern.permute.xlu0 0
    %307 = vperm.xlu0 %306, %v252
    %v308 = vpop.permute.xlu0 %307
    %311 = vset.pattern.permute.xlu0 0
    %312 = vperm.xlu0 %311, %v253
    %v313 = vpop.permute.xlu0 %312
    %316 = vset.pattern.permute.xlu0 0
    %317 = vperm.xlu0 %316, %v254
    %v318 = vpop.permute.xlu0 %317
    %321 = vset.pattern.permute.xlu0 0
    %322 = vperm.xlu0 %321, %v255
    %v323 = vpop.permute.xlu0 %322
    %326 = vset.pattern.permute.xlu0 0
    %327 = vperm.xlu0 %326, %v256
    %v328 = vpop.permute.xlu0 %327
    %331 = vset.pattern.permute.xlu0 0
    %332 = vperm.xlu0 %331, %v257
    %v333 = vpop.permute.xlu0 %332
    %336 = vset.pattern.permute.xlu0 0
    %337 = vperm.xlu0 %336, %v258
    %v338 = vpop.permute.xlu0 %337
    %v341 = vlaneseq
    %v342 = vshrl.u32 %v341, 7
    %v343 = vsub.s32 0, %v342
    %v344 = vrot.slane %v259, %v343
    %v346 = vadd.f32 %v263, %v344
    %v347 = vadd.f32 %v268, %v344
    %v348 = vadd.f32 %v273, %v344
    %v349 = vadd.f32 %v278, %v344
    %v350 = vadd.f32 %v283, %v344
    %v351 = vadd.f32 %v288, %v344
    %v352 = vadd.f32 %v293, %v344
    %v353 = vadd.f32 %v298, %v344
    %v354 = vadd.f32 %v303, %v344
    %v355 = vadd.f32 %v308, %v344
    %v356 = vadd.f32 %v313, %v344
    %v357 = vadd.f32 %v318, %v344
    %v358 = vadd.f32 %v323, %v344
    %v359 = vadd.f32 %v328, %v344
    %v360 = vadd.f32 %v333, %v344
    %v361 = vadd.f32 %v338, %v344
    %v362 = vmul.f32 %v165, 2.0
    %v363 = vmul.f32 %v170, 2.0
    %v364 = vmul.f32 %v175, 2.0
    %v365 = vmul.f32 %v180, 2.0
    %v366 = vmul.f32 %v185, 2.0
    %v367 = vmul.f32 %v190, 2.0
    %v368 = vmul.f32 %v195, 2.0
    %v369 = vmul.f32 %v200, 2.0
    %v370 = vmul.f32 %v205, 2.0
    %v371 = vmul.f32 %v210, 2.0
    %v372 = vmul.f32 %v215, 2.0
    %v373 = vmul.f32 %v220, 2.0
    %v374 = vmul.f32 %v225, 2.0
    %v375 = vmul.f32 %v230, 2.0
    %v376 = vmul.f32 %v235, 2.0
    %v377 = vmul.f32 %v240, 2.0
    %v378 = vsub.f32 %v346, %v362
    %v379 = vsub.f32 %v347, %v363
    %v380 = vsub.f32 %v348, %v364
    %v381 = vsub.f32 %v349, %v365
    %v382 = vsub.f32 %v350, %v366
    %v383 = vsub.f32 %v351, %v367
    %v384 = vsub.f32 %v352, %v368
    %v385 = vsub.f32 %v353, %v369
    %v386 = vsub.f32 %v354, %v370
    %v387 = vsub.f32 %v355, %v371
    %v388 = vsub.f32 %v356, %v372
    %v389 = vsub.f32 %v357, %v373
    %v390 = vsub.f32 %v358, %v374
    %v391 = vsub.f32 %v359, %v375
    %v392 = vsub.f32 %v360, %v376
    %v393 = vsub.f32 %v361, %v377
    %v394 = vmax.f32 %v378, 0.0
    %v395 = vmax.f32 %v379, 0.0
    %v396 = vmax.f32 %v380, 0.0
    %v397 = vmax.f32 %v381, 0.0
    %v398 = vmax.f32 %v382, 0.0
    %v399 = vmax.f32 %v383, 0.0
    %v400 = vmax.f32 %v384, 0.0
    %v401 = vmax.f32 %v385, 0.0
    %v402 = vmax.f32 %v386, 0.0
    %v403 = vmax.f32 %v387, 0.0
    %v404 = vmax.f32 %v388, 0.0
    %v405 = vmax.f32 %v389, 0.0
    %v406 = vmax.f32 %v390, 0.0
    %v407 = vmax.f32 %v391, 0.0
    %v408 = vmax.f32 %v392, 0.0
    %v409 = vmax.f32 %v393, 0.0
    %v410 = vmul.f32 %v394, -0.005
    %v411 = vmul.f32 %v395, -0.005
    %v412 = vmul.f32 %v396, -0.005
    %v413 = vmul.f32 %v397, -0.005
    %v414 = vmul.f32 %v398, -0.005
    %v415 = vmul.f32 %v399, -0.005
    %v416 = vmul.f32 %v400, -0.005
    %v417 = vmul.f32 %v401, -0.005
    %v418 = vmul.f32 %v402, -0.005
    %v419 = vmul.f32 %v403, -0.005
    %v420 = vmul.f32 %v404, -0.005
    %v421 = vmul.f32 %v405, -0.005
    %v422 = vmul.f32 %v406, -0.005
    %v423 = vmul.f32 %v407, -0.005
    %v424 = vmul.f32 %v408, -0.005
    %v425 = vmul.f32 %v409, -0.005
    %v426 = vmul.f32 %v410, 1.442695
    %v427 = vpow.pop %v426
    %v428 = vmul.f32 %v411, 1.442695
    %v429 = vpow.pop %v428
    %v430 = vmul.f32 %v412, 1.442695
    %v431 = vpow.pop %v430
    %v432 = vmul.f32 %v413, 1.442695
    %v433 = vpow.pop %v432
    %v434 = vmul.f32 %v414, 1.442695
    %v435 = vpow.pop %v434
    %v436 = vmul.f32 %v415, 1.442695
    %v437 = vpow.pop %v436
    %v438 = vmul.f32 %v416, 1.442695
    %v439 = vpow.pop %v438
    %v440 = vmul.f32 %v417, 1.442695
    %v441 = vpow.pop %v440
    %v442 = vmul.f32 %v418, 1.442695
    %v443 = vpow.pop %v442
    %v444 = vmul.f32 %v419, 1.442695
    %v445 = vpow.pop %v444
    %v446 = vmul.f32 %v420, 1.442695
    %v447 = vpow.pop %v446
    %v448 = vmul.f32 %v421, 1.442695
    %v449 = vpow.pop %v448
    %v450 = vmul.f32 %v422, 1.442695
    %v451 = vpow.pop %v450
    %v452 = vmul.f32 %v423, 1.442695
    %v453 = vpow.pop %v452
    %v454 = vmul.f32 %v424, 1.442695
    %v455 = vpow.pop %v454
    %v456 = vmul.f32 %v425, 1.442695
    %v457 = vpow.pop %v456
    %v458 = vmul.f32 %v427, %v427
    %v459 = vmul.f32 %v429, %v429
    %v460 = vmul.f32 %v431, %v431
    %v461 = vmul.f32 %v433, %v433
    %v462 = vmul.f32 %v435, %v435
    %v463 = vmul.f32 %v437, %v437
    %v464 = vmul.f32 %v439, %v439
    %v465 = vmul.f32 %v441, %v441
    %v466 = vmul.f32 %v443, %v443
    %v467 = vmul.f32 %v445, %v445
    %v468 = vmul.f32 %v447, %v447
    %v469 = vmul.f32 %v449, %v449
    %v470 = vmul.f32 %v451, %v451
    %v471 = vmul.f32 %v453, %v453
    %v472 = vmul.f32 %v455, %v455
    %v473 = vmul.f32 %v457, %v457
    %v474 = vmul.f32 %v394, -0.5
    %v475 = vmul.f32 %v395, -0.5
    %v476 = vmul.f32 %v396, -0.5
    %v477 = vmul.f32 %v397, -0.5
    %v478 = vmul.f32 %v398, -0.5
    %v479 = vmul.f32 %v399, -0.5
    %v480 = vmul.f32 %v400, -0.5
    %v481 = vmul.f32 %v401, -0.5
    %v482 = vmul.f32 %v402, -0.5
    %v483 = vmul.f32 %v403, -0.5
    %v484 = vmul.f32 %v404, -0.5
    %v485 = vmul.f32 %v405, -0.5
    %v486 = vmul.f32 %v406, -0.5
    %v487 = vmul.f32 %v407, -0.5
    %v488 = vmul.f32 %v408, -0.5
    %v489 = vmul.f32 %v409, -0.5
    %v490 = vmul.f32 %v474, 1.442695
    %v491 = vpow.pop %v490
    %v492 = vmul.f32 %v475, 1.442695
    %v493 = vpow.pop %v492
    %v494 = vmul.f32 %v476, 1.442695
    %v495 = vpow.pop %v494
    %v496 = vmul.f32 %v477, 1.442695
    %v497 = vpow.pop %v496
    %v498 = vmul.f32 %v478, 1.442695
    %v499 = vpow.pop %v498
    %v500 = vmul.f32 %v479, 1.442695
    %v501 = vpow.pop %v500
    %v502 = vmul.f32 %v480, 1.442695
    %v503 = vpow.pop %v502
    %v504 = vmul.f32 %v481, 1.442695
    %v505 = vpow.pop %v504
    %v506 = vmul.f32 %v482, 1.442695
    %v507 = vpow.pop %v506
    %v508 = vmul.f32 %v483, 1.442695
    %v509 = vpow.pop %v508
    %v510 = vmul.f32 %v484, 1.442695
    %v511 = vpow.pop %v510
    %v512 = vmul.f32 %v485, 1.442695
    %v513 = vpow.pop %v512
    %v514 = vmul.f32 %v486, 1.442695
    %v515 = vpow.pop %v514
    %v516 = vmul.f32 %v487, 1.442695
    %v517 = vpow.pop %v516
    %v518 = vmul.f32 %v488, 1.442695
    %v519 = vpow.pop %v518
    %v520 = vmul.f32 %v489, 1.442695
    %v521 = vpow.pop %v520
    %v522 = vmul.f32 %v458, %v458
    %v523 = vmul.f32 %v459, %v459
    %v524 = vmul.f32 %v460, %v460
    %v525 = vmul.f32 %v461, %v461
    %v526 = vmul.f32 %v462, %v462
    %v527 = vmul.f32 %v463, %v463
    %v528 = vmul.f32 %v464, %v464
    %v529 = vmul.f32 %v465, %v465
    %v530 = vmul.f32 %v466, %v466
    %v531 = vmul.f32 %v467, %v467
    %v532 = vmul.f32 %v468, %v468
    %v533 = vmul.f32 %v469, %v469
    %v534 = vmul.f32 %v470, %v470
    %v535 = vmul.f32 %v471, %v471
    %v536 = vmul.f32 %v472, %v472
    %v537 = vmul.f32 %v473, %v473
    %v538 = vadd.f32 %v491, %v522
    %v539 = vadd.f32 %v493, %v523
    %v540 = vadd.f32 %v495, %v524
    %v541 = vadd.f32 %v497, %v525
    %v542 = vadd.f32 %v499, %v526
    %v543 = vadd.f32 %v501, %v527
    %v544 = vadd.f32 %v503, %v528
    %v545 = vadd.f32 %v505, %v529
    %v546 = vadd.f32 %v507, %v530
    %v547 = vadd.f32 %v509, %v531
    %v548 = vadd.f32 %v511, %v532
    %v549 = vadd.f32 %v513, %v533
    %v550 = vadd.f32 %v515, %v534
    %v551 = vadd.f32 %v517, %v535
    %v552 = vadd.f32 %v519, %v536
    %v553 = vadd.f32 %v521, %v537
    %v554 = vadd.f32 %v538, %v427
    %v555 = vadd.f32 %v539, %v429
    %v556 = vadd.f32 %v540, %v431
    %v557 = vadd.f32 %v541, %v433
    %v558 = vadd.f32 %v542, %v435
    %v559 = vadd.f32 %v543, %v437
    %v560 = vadd.f32 %v544, %v439
    %v561 = vadd.f32 %v545, %v441
    %v562 = vadd.f32 %v546, %v443
    %v563 = vadd.f32 %v547, %v445
    %v564 = vadd.f32 %v548, %v447
    %v565 = vadd.f32 %v549, %v449
    %v566 = vadd.f32 %v550, %v451
    %v567 = vadd.f32 %v551, %v453
    %v568 = vadd.f32 %v552, %v455
    %v569 = vadd.f32 %v553, %v457
    %v570 = vadd.f32 %v554, %v555
    %v571 = vadd.f32 %v570, %v556
    %v572 = vadd.f32 %v571, %v557
    %v573 = vadd.f32 %v572, %v558
    %v574 = vadd.f32 %v573, %v559
    %v575 = vadd.f32 %v574, %v560
    %v576 = vadd.f32 %v575, %v561
    %v577 = vadd.f32 %v576, %v562
    %v578 = vadd.f32 %v577, %v563
    %v579 = vadd.f32 %v578, %v564
    %v580 = vadd.f32 %v579, %v565
    %v581 = vadd.f32 %v580, %v566
    %v582 = vadd.f32 %v581, %v567
    %v583 = vadd.f32 %v582, %v568
    %v584 = vadd.f32 %v583, %v569
    %v585 = vrot.slane %v584, 4
    %v586 = vadd.f32 %v584, %v585
    %v587 = vrot.slane %v586, 2
    %v588 = vadd.f32 %v586, %v587
    %v589 = vrot.slane %v588, 1
    %v590 = vadd.f32 %v588, %v589
    %v591 = vadd.f32 %v65, %v590
    %592 = vst [vmem:[#allocation4] sm:$0x1] %v591
    %p593 = scmp.ge.s32.totalorder 0, 0
    // Predicated region
    $region46: #{tpu_custom_call.1} parent=1 // pred_check
      %p594 = pneg %p593
    $region47: #{tpu_custom_call.1} parent=1 // pred_check_branch
      %596 = sbr.rel (%p594) target = $region49
    $region48: #{tpu_custom_call.1} parent=1 // pred_region
      %p597 = scmp.gt.s32.totalorder 0, 0
      %s598 = scalar_select %p597, 2.0, 1.0
      %v599 = vld [vmem:[#allocation2] sm:$0x1]
      %v600 = vld [vmem:[%s0] sm:$0xff]
      %v601 = vld [vmem:[%s0 + $0x8] sm:$0xff]
      %v602 = vld [vmem:[%s0 + $0x10] sm:$0xff]
      %v603 = vld [vmem:[%s0 + $0x18] sm:$0xff]
      %v604 = vld [vmem:[%s0 + $0x20] sm:$0xff]
      %v605 = vld [vmem:[%s0 + $0x28] sm:$0xff]
      %v606 = vld [vmem:[%s0 + $0x30] sm:$0xff]
      %v607 = vld [vmem:[%s0 + $0x38] sm:$0xff]
      %v608 = vld [vmem:[%s0 + $0x40] sm:$0xff]
      %v609 = vld [vmem:[%s0 + $0x48] sm:$0xff]
      %v610 = vld [vmem:[%s0 + $0x50] sm:$0xff]
      %v611 = vld [vmem:[%s0 + $0x58] sm:$0xff]
      %v612 = vld [vmem:[%s0 + $0x60] sm:$0xff]
      %v613 = vld [vmem:[%s0 + $0x68] sm:$0xff]
      %v614 = vld [vmem:[%s0 + $0x70] sm:$0xff]
      %v615 = vld [vmem:[%s0 + $0x78] sm:$0xff]
      %v616 = vld [vmem:[%s1] sm:$0xff]
      %v617 = vld [vmem:[%s1 + $0x8] sm:$0xff]
      %v618 = vld [vmem:[%s1 + $0x10] sm:$0xff]
      %v619 = vld [vmem:[%s1 + $0x18] sm:$0xff]
      %v620 = vld [vmem:[%s1 + $0x20] sm:$0xff]
      %v621 = vld [vmem:[%s1 + $0x28] sm:$0xff]
      %v622 = vld [vmem:[%s1 + $0x30] sm:$0xff]
      %v623 = vld [vmem:[%s1 + $0x38] sm:$0xff]
      %v624 = vld [vmem:[%s1 + $0x40] sm:$0xff]
      %v625 = vld [vmem:[%s1 + $0x48] sm:$0xff]
      %v626 = vld [vmem:[%s1 + $0x50] sm:$0xff]
      %v627 = vld [vmem:[%s1 + $0x58] sm:$0xff]
      %v628 = vld [vmem:[%s1 + $0x60] sm:$0xff]
      %v629 = vld [vmem:[%s1 + $0x68] sm:$0xff]
      %v630 = vld [vmem:[%s1 + $0x70] sm:$0xff]
      %v631 = vld [vmem:[%s1 + $0x78] sm:$0xff]
      %632 = vmatprep.subr.mxu0 0.0
      %633 = vmatpush1.xpose.msra.mxu0 %v616
      %634 = vmatprep.subr.mxu0 0.0
      %635 = vmatpush1.xpose.msra.mxu0 %v617
      %636 = vmatprep.subr.mxu0 0.0
      %637 = vmatpush1.xpose.msra.mxu0 %v618
      %638 = vmatprep.subr.mxu0 0.0
      %639 = vmatpush1.xpose.msra.mxu0 %v619
      %640 = vmatprep.subr.mxu0 0.0
      %641 = vmatpush1.xpose.msra.mxu0 %v620
      %642 = vmatprep.subr.mxu0 0.0
      %643 = vmatpush1.xpose.msra.mxu0 %v621
      %644 = vmatprep.subr.mxu0 0.0
      %645 = vmatpush1.xpose.msra.mxu0 %v622
      %646 = vmatprep.subr.mxu0 0.0
      %647 = vmatpush1.xpose.msra.mxu0 %v623
      %648 = vmatprep.subr.mxu0 0.0
      %649 = vmatpush1.xpose.msra.mxu0 %v624
      %650 = vmatprep.subr.mxu0 0.0
      %651 = vmatpush1.xpose.msra.mxu0 %v625
      %652 = vmatprep.subr.mxu0 0.0
      %653 = vmatpush1.xpose.msra.mxu0 %v626
      %654 = vmatprep.subr.mxu0 0.0
      %655 = vmatpush1.xpose.msra.mxu0 %v627
      %656 = vmatprep.subr.mxu0 0.0
      %657 = vmatpush1.xpose.msra.mxu0 %v628
      %658 = vmatprep.subr.mxu0 0.0
      %659 = vmatpush1.xpose.msra.mxu0 %v629
      %660 = vmatprep.subr.mxu0 0.0
      %661 = vmatpush1.xpose.msra.mxu0 %v630
      %662 = vmatprep.subr.mxu0 0.0
      %663 = vmatpush1.xpose.msra.mxu0 %v631
      %664 = vmatprep.subr.mxu0 0.0
      %665 = vmatpush1.xpose.msra.mxu0 0.0
      %666 = vmatprep.subr.mxu0 0.0
      %667 = vmatpush1.xpose.msra.mxu0 0.0
      %668 = vmatprep.subr.mxu0 0.0
      %669 = vmatpush1.xpose.msra.mxu0 0.0
      %670 = vmatprep.subr.mxu0 0.0
      %671 = vmatpush1.xpose.msra.mxu0 0.0
      %672 = vmatprep.subr.mxu0 0.0
      %673 = vmatpush1.xpose.msra.mxu0 0.0
      %674 = vmatprep.subr.mxu0 0.0
      %675 = vmatpush1.xpose.msra.mxu0 0.0
      %676 = vmatprep.subr.mxu0 0.0
      %677 = vmatpush1.xpose.msra.mxu0 0.0
      %678 = vmatprep.subr.mxu0 0.0
      %679 = vmatpush1.xpose.msra.mxu0 0.0
      %680 = vmatprep.subr.mxu0 0.0
      %681 = vmatpush1.xpose.msra.mxu0 0.0
      %682 = vmatprep.subr.mxu0 0.0
      %683 = vmatpush1.xpose.msra.mxu0 0.0
      %684 = vmatprep.subr.mxu0 0.0
      %685 = vmatpush1.xpose.msra.mxu0 0.0
      %686 = vmatprep.subr.mxu0 0.0
      %687 = vmatpush1.xpose.msra.mxu0 0.0
      %688 = vmatprep.subr.mxu0 0.0
      %689 = vmatpush1.xpose.msra.mxu0 0.0
      %690 = vmatprep.subr.mxu0 0.0
      %691 = vmatpush1.xpose.msra.mxu0 0.0
      %692 = vmatprep.subr.mxu0 0.0
      %693 = vmatpush1.xpose.msra.mxu0 0.0
      %694 = vmatprep.subr.mxu0 0.0
      %695 = vmatpush1.xpose.msra.mxu0 0.0
      %696 = vmatprep.mubr.f32.mxu0 0.0
      %697 = vmatmul.mubr.f32.gmra.mrb[0].mxu0 %v600
      %v698 = vpop.f32.mrb[0].mxu0
      %v699 = vadd.f32 0.0, %v698
      %v700 = vpop.f32.mrb[0].mxu0
      %701 = vmatprep.mubr.f32.mxu0 0.0
      %702 = vmatmul.mubr.f32.gmra.mrb[0].mxu0 %v601
      %v703 = vpop.f32.mrb[0].mxu0
      %v704 = vadd.f32 0.0, %v703
      %v705 = vpop.f32.mrb[0].mxu0
      %706 = vmatprep.mubr.f32.mxu0 0.0
      %707 = vmatmul.mubr.f32.gmra.mrb[0].mxu0 %v602
      %v708 = vpop.f32.mrb[0].mxu0
      %v709 = vadd.f32 0.0, %v708
      %v710 = vpop.f32.mrb[0].mxu0
      %711 = vmatprep.mubr.f32.mxu0 0.0
      %712 = vmatmul.mubr.f32.gmra.mrb[0].mxu0 %v603
      %v713 = vpop.f32.mrb[0].mxu0
      %v714 = vadd.f32 0.0, %v713
      %v715 = vpop.f32.mrb[0].mxu0
      %716 = vmatprep.mubr.f32.mxu0 0.0
      %717 = vmatmul.mubr.f32.gmra.mrb[0].mxu0 %v604
      %v718 = vpop.f32.mrb[0].mxu0
      %v719 = vadd.f32 0.0, %v718
      %v720 = vpop.f32.mrb[0].mxu0
      %721 = vmatprep.mubr.f32.mxu0 0.0
      %722 = vmatmul.mubr.f32.gmra.mrb[0].mxu0 %v605
      %v723 = vpop.f32.mrb[0].mxu0
      %v724 = vadd.f32 0.0, %v723
      %v725 = vpop.f32.mrb[0].mxu0
      %726 = vmatprep.mubr.f32.mxu0 0.0
      %727 = vmatmul.mubr.f32.gmra.mrb[0].mxu0 %v606
      %v728 = vpop.f32.mrb[0].mxu0
      %v729 = vadd.f32 0.0, %v728
      %v730 = vpop.f32.mrb[0].mxu0
      %731 = vmatprep.mubr.f32.mxu0 0.0
      %732 = vmatmul.mubr.f32.gmra.mrb[0].mxu0 %v607
      %v733 = vpop.f32.mrb[0].mxu0
      %v734 = vadd.f32 0.0, %v733
      %v735 = vpop.f32.mrb[0].mxu0
      %736 = vmatprep.mubr.f32.mxu0 0.0
      %737 = vmatmul.mubr.f32.gmra.mrb[0].mxu0 %v608
      %v738 = vpop.f32.mrb[0].mxu0
      %v739 = vadd.f32 0.0, %v738
      %v740 = vpop.f32.mrb[0].mxu0
      %741 = vmatprep.mubr.f32.mxu0 0.0
      %742 = vmatmul.mubr.f32.gmra.mrb[0].mxu0 %v609
      %v743 = vpop.f32.mrb[0].mxu0
      %v744 = vadd.f32 0.0, %v743
      %v745 = vpop.f32.mrb[0].mxu0
      %746 = vmatprep.mubr.f32.mxu0 0.0
      %747 = vmatmul.mubr.f32.gmra.mrb[0].mxu0 %v610
      %v748 = vpop.f32.mrb[0].mxu0
      %v749 = vadd.f32 0.0, %v748
      %v750 = vpop.f32.mrb[0].mxu0
      %751 = vmatprep.mubr.f32.mxu0 0.0
      %752 = vmatmul.mubr.f32.gmra.mrb[0].mxu0 %v611
      %v753 = vpop.f32.mrb[0].mxu0
      %v754 = vadd.f32 0.0, %v753
      %v755 = vpop.f32.mrb[0].mxu0
      %756 = vmatprep.mubr.f32.mxu0 0.0
      %757 = vmatmul.mubr.f32.gmra.mrb[0].mxu0 %v612
      %v758 = vpop.f32.mrb[0].mxu0
      %v759 = vadd.f32 0.0, %v758
      %v760 = vpop.f32.mrb[0].mxu0
      %761 = vmatprep.mubr.f32.mxu0 0.0
      %762 = vmatmul.mubr.f32.gmra.mrb[0].mxu0 %v613
      %v763 = vpop.f32.mrb[0].mxu0
      %v764 = vadd.f32 0.0, %v763
      %v765 = vpop.f32.mrb[0].mxu0
      %766 = vmatprep.mubr.f32.mxu0 0.0
      %767 = vmatmul.mubr.f32.gmra.mrb[0].mxu0 %v614
      %v768 = vpop.f32.mrb[0].mxu0
      %v769 = vadd.f32 0.0, %v768
      %v770 = vpop.f32.mrb[0].mxu0
      %771 = vmatprep.mubr.f32.mxu0 0.0
      %772 = vmatmul.mubr.f32.gmra.mrb[0].mxu0 %v615
      %v773 = vpop.f32.mrb[0].mxu0
      %v774 = vadd.f32 0.0, %v773
      %v775 = vpop.f32.mrb[0].mxu0
      %776 = vdwg.mxu0
      %v777 = vld [vmem:[%s4] sm:$0xff]
      %v778 = vld [vmem:[%s4 + $0x8] sm:$0xff]
      %v779 = vld [vmem:[%s4 + $0x10] sm:$0xff]
      %v780 = vld [vmem:[%s4 + $0x18] sm:$0xff]
      %v781 = vld [vmem:[%s4 + $0x20] sm:$0xff]
      %v782 = vld [vmem:[%s4 + $0x28] sm:$0xff]
      %v783 = vld [vmem:[%s4 + $0x30] sm:$0xff]
      %v784 = vld [vmem:[%s4 + $0x38] sm:$0xff]
      %v785 = vld [vmem:[%s4 + $0x40] sm:$0xff]
      %v786 = vld [vmem:[%s4 + $0x48] sm:$0xff]
      %v787 = vld [vmem:[%s4 + $0x50] sm:$0xff]
      %v788 = vld [vmem:[%s4 + $0x58] sm:$0xff]
      %v789 = vld [vmem:[%s4 + $0x60] sm:$0xff]
      %v790 = vld [vmem:[%s4 + $0x68] sm:$0xff]
      %v791 = vld [vmem:[%s4 + $0x70] sm:$0xff]
      %v792 = vld [vmem:[%s4 + $0x78] sm:$0xff]
      %v793 = vld [vmem:[%s5] sm:$0x1]
      %795 = vset.pattern.permute.xlu0 0
      %796 = vperm.xlu0 %795, %v777
      %v797 = vpop.permute.xlu0 %796
      %800 = vset.pattern.permute.xlu0 0
      %801 = vperm.xlu0 %800, %v778
      %v802 = vpop.permute.xlu0 %801
      %805 = vset.pattern.permute.xlu0 0
      %806 = vperm.xlu0 %805, %v779
      %v807 = vpop.permute.xlu0 %806
      %810 = vset.pattern.permute.xlu0 0
      %811 = vperm.xlu0 %810, %v780
      %v812 = vpop.permute.xlu0 %811
      %815 = vset.pattern.permute.xlu0 0
      %816 = vperm.xlu0 %815, %v781
      %v817 = vpop.permute.xlu0 %816
      %820 = vset.pattern.permute.xlu0 0
      %821 = vperm.xlu0 %820, %v782
      %v822 = vpop.permute.xlu0 %821
      %825 = vset.pattern.permute.xlu0 0
      %826 = vperm.xlu0 %825, %v783
      %v827 = vpop.permute.xlu0 %826
      %830 = vset.pattern.permute.xlu0 0
      %831 = vperm.xlu0 %830, %v784
      %v832 = vpop.permute.xlu0 %831
      %835 = vset.pattern.permute.xlu0 0
      %836 = vperm.xlu0 %835, %v785
      %v837 = vpop.permute.xlu0 %836
      %840 = vset.pattern.permute.xlu0 0
      %841 = vperm.xlu0 %840, %v786
      %v842 = vpop.permute.xlu0 %841
      %845 = vset.pattern.permute.xlu0 0
      %846 = vperm.xlu0 %845, %v787
      %v847 = vpop.permute.xlu0 %846
      %850 = vset.pattern.permute.xlu0 0
      %851 = vperm.xlu0 %850, %v788
      %v852 = vpop.permute.xlu0 %851
      %855 = vset.pattern.permute.xlu0 0
      %856 = vperm.xlu0 %855, %v789
      %v857 = vpop.permute.xlu0 %856
      %860 = vset.pattern.permute.xlu0 0
      %861 = vperm.xlu0 %860, %v790
      %v862 = vpop.permute.xlu0 %861
      %865 = vset.pattern.permute.xlu0 0
      %866 = vperm.xlu0 %865, %v791
      %v867 = vpop.permute.xlu0 %866
      %870 = vset.pattern.permute.xlu0 0
      %871 = vperm.xlu0 %870, %v792
      %v872 = vpop.permute.xlu0 %871
      %v875 = vlaneseq
      %v876 = vshrl.u32 %v875, 7
      %v877 = vsub.s32 0, %v876
      %v878 = vrot.slane %v793, %v877
      %v880 = vadd.f32 %v797, %v878
      %v881 = vadd.f32 %v802, %v878
      %v882 = vadd.f32 %v807, %v878
      %v883 = vadd.f32 %v812, %v878
      %v884 = vadd.f32 %v817, %v878
      %v885 = vadd.f32 %v822, %v878
      %v886 = vadd.f32 %v827, %v878
      %v887 = vadd.f32 %v832, %v878
      %v888 = vadd.f32 %v837, %v878
      %v889 = vadd.f32 %v842, %v878
      %v890 = vadd.f32 %v847, %v878
      %v891 = vadd.f32 %v852, %v878
      %v892 = vadd.f32 %v857, %v878
      %v893 = vadd.f32 %v862, %v878
      %v894 = vadd.f32 %v867, %v878
      %v895 = vadd.f32 %v872, %v878
      %v896 = vmul.f32 %v699, 2.0
      %v897 = vmul.f32 %v704, 2.0
      %v898 = vmul.f32 %v709, 2.0
      %v899 = vmul.f32 %v714, 2.0
      %v900 = vmul.f32 %v719, 2.0
      %v901 = vmul.f32 %v724, 2.0
      %v902 = vmul.f32 %v729, 2.0
      %v903 = vmul.f32 %v734, 2.0
      %v904 = vmul.f32 %v739, 2.0
      %v905 = vmul.f32 %v744, 2.0
      %v906 = vmul.f32 %v749, 2.0
      %v907 = vmul.f32 %v754, 2.0
      %v908 = vmul.f32 %v759, 2.0
      %v909 = vmul.f32 %v764, 2.0
      %v910 = vmul.f32 %v769, 2.0
      %v911 = vmul.f32 %v774, 2.0
      %v912 = vsub.f32 %v880, %v896
      %v913 = vsub.f32 %v881, %v897
      %v914 = vsub.f32 %v882, %v898
      %v915 = vsub.f32 %v883, %v899
      %v916 = vsub.f32 %v884, %v900
      %v917 = vsub.f32 %v885, %v901
      %v918 = vsub.f32 %v886, %v902
      %v919 = vsub.f32 %v887, %v903
      %v920 = vsub.f32 %v888, %v904
      %v921 = vsub.f32 %v889, %v905
      %v922 = vsub.f32 %v890, %v906
      %v923 = vsub.f32 %v891, %v907
      %v924 = vsub.f32 %v892, %v908
      %v925 = vsub.f32 %v893, %v909
      %v926 = vsub.f32 %v894, %v910
      %v927 = vsub.f32 %v895, %v911
      %v928 = vmax.f32 %v912, 0.0
      %v929 = vmax.f32 %v913, 0.0
      %v930 = vmax.f32 %v914, 0.0
      %v931 = vmax.f32 %v915, 0.0
      %v932 = vmax.f32 %v916, 0.0
      %v933 = vmax.f32 %v917, 0.0
      %v934 = vmax.f32 %v918, 0.0
      %v935 = vmax.f32 %v919, 0.0
      %v936 = vmax.f32 %v920, 0.0
      %v937 = vmax.f32 %v921, 0.0
      %v938 = vmax.f32 %v922, 0.0
      %v939 = vmax.f32 %v923, 0.0
      %v940 = vmax.f32 %v924, 0.0
      %v941 = vmax.f32 %v925, 0.0
      %v942 = vmax.f32 %v926, 0.0
      %v943 = vmax.f32 %v927, 0.0
      %v944 = vmul.f32 %v928, -0.005
      %v945 = vmul.f32 %v929, -0.005
      %v946 = vmul.f32 %v930, -0.005
      %v947 = vmul.f32 %v931, -0.005
      %v948 = vmul.f32 %v932, -0.005
      %v949 = vmul.f32 %v933, -0.005
      %v950 = vmul.f32 %v934, -0.005
      %v951 = vmul.f32 %v935, -0.005
      %v952 = vmul.f32 %v936, -0.005
      %v953 = vmul.f32 %v937, -0.005
      %v954 = vmul.f32 %v938, -0.005
      %v955 = vmul.f32 %v939, -0.005
      %v956 = vmul.f32 %v940, -0.005
      %v957 = vmul.f32 %v941, -0.005
      %v958 = vmul.f32 %v942, -0.005
      %v959 = vmul.f32 %v943, -0.005
      %v960 = vmul.f32 %v944, 1.442695
      %v961 = vpow.pop %v960
      %v962 = vmul.f32 %v945, 1.442695
      %v963 = vpow.pop %v962
      %v964 = vmul.f32 %v946, 1.442695
      %v965 = vpow.pop %v964
      %v966 = vmul.f32 %v947, 1.442695
      %v967 = vpow.pop %v966
      %v968 = vmul.f32 %v948, 1.442695
      %v969 = vpow.pop %v968
      %v970 = vmul.f32 %v949, 1.442695
      %v971 = vpow.pop %v970
      %v972 = vmul.f32 %v950, 1.442695
      %v973 = vpow.pop %v972
      %v974 = vmul.f32 %v951, 1.442695
      %v975 = vpow.pop %v974
      %v976 = vmul.f32 %v952, 1.442695
      %v977 = vpow.pop %v976
      %v978 = vmul.f32 %v953, 1.442695
      %v979 = vpow.pop %v978
      %v980 = vmul.f32 %v954, 1.442695
      %v981 = vpow.pop %v980
      %v982 = vmul.f32 %v955, 1.442695
      %v983 = vpow.pop %v982
      %v984 = vmul.f32 %v956, 1.442695
      %v985 = vpow.pop %v984
      %v986 = vmul.f32 %v957, 1.442695
      %v987 = vpow.pop %v986
      %v988 = vmul.f32 %v958, 1.442695
      %v989 = vpow.pop %v988
      %v990 = vmul.f32 %v959, 1.442695
      %v991 = vpow.pop %v990
      %v992 = vmul.f32 %v961, %v961
      %v993 = vmul.f32 %v963, %v963
      %v994 = vmul.f32 %v965, %v965
      %v995 = vmul.f32 %v967, %v967
      %v996 = vmul.f32 %v969, %v969
      %v997 = vmul.f32 %v971, %v971
      %v998 = vmul.f32 %v973, %v973
      %v999 = vmul.f32 %v975, %v975
      %v1000 = vmul.f32 %v977, %v977
      %v1001 = vmul.f32 %v979, %v979
      %v1002 = vmul.f32 %v981, %v981
      %v1003 = vmul.f32 %v983, %v983
      %v1004 = vmul.f32 %v985, %v985
      %v1005 = vmul.f32 %v987, %v987
      %v1006 = vmul.f32 %v989, %v989
      %v1007 = vmul.f32 %v991, %v991
      %v1008 = vmul.f32 %v928, -0.5
      %v1009 = vmul.f32 %v929, -0.5
      %v1010 = vmul.f32 %v930, -0.5
      %v1011 = vmul.f32 %v931, -0.5
      %v1012 = vmul.f32 %v932, -0.5
      %v1013 = vmul.f32 %v933, -0.5
      %v1014 = vmul.f32 %v934, -0.5
      %v1015 = vmul.f32 %v935, -0.5
      %v1016 = vmul.f32 %v936, -0.5
      %v1017 = vmul.f32 %v937, -0.5
      %v1018 = vmul.f32 %v938, -0.5
      %v1019 = vmul.f32 %v939, -0.5
      %v1020 = vmul.f32 %v940, -0.5
      %v1021 = vmul.f32 %v941, -0.5
      %v1022 = vmul.f32 %v942, -0.5
      %v1023 = vmul.f32 %v943, -0.5
      %v1024 = vmul.f32 %v1008, 1.442695
      %v1025 = vpow.pop %v1024
      %v1026 = vmul.f32 %v1009, 1.442695
      %v1027 = vpow.pop %v1026
      %v1028 = vmul.f32 %v1010, 1.442695
      %v1029 = vpow.pop %v1028
      %v1030 = vmul.f32 %v1011, 1.442695
      %v1031 = vpow.pop %v1030
      %v1032 = vmul.f32 %v1012, 1.442695
      %v1033 = vpow.pop %v1032
      %v1034 = vmul.f32 %v1013, 1.442695
      %v1035 = vpow.pop %v1034
      %v1036 = vmul.f32 %v1014, 1.442695
      %v1037 = vpow.pop %v1036
      %v1038 = vmul.f32 %v1015, 1.442695
      %v1039 = vpow.pop %v1038
      %v1040 = vmul.f32 %v1016, 1.442695
      %v1041 = vpow.pop %v1040
      %v1042 = vmul.f32 %v1017, 1.442695
      %v1043 = vpow.pop %v1042
      %v1044 = vmul.f32 %v1018, 1.442695
      %v1045 = vpow.pop %v1044
      %v1046 = vmul.f32 %v1019, 1.442695
      %v1047 = vpow.pop %v1046
      %v1048 = vmul.f32 %v1020, 1.442695
      %v1049 = vpow.pop %v1048
      %v1050 = vmul.f32 %v1021, 1.442695
      %v1051 = vpow.pop %v1050
      %v1052 = vmul.f32 %v1022, 1.442695
      %v1053 = vpow.pop %v1052
      %v1054 = vmul.f32 %v1023, 1.442695
      %v1055 = vpow.pop %v1054
      %v1056 = vmul.f32 %v992, %v992
      %v1057 = vmul.f32 %v993, %v993
      %v1058 = vmul.f32 %v994, %v994
      %v1059 = vmul.f32 %v995, %v995
      %v1060 = vmul.f32 %v996, %v996
      %v1061 = vmul.f32 %v997, %v997
      %v1062 = vmul.f32 %v998, %v998
      %v1063 = vmul.f32 %v999, %v999
      %v1064 = vmul.f32 %v1000, %v1000
      %v1065 = vmul.f32 %v1001, %v1001
      %v1066 = vmul.f32 %v1002, %v1002
      %v1067 = vmul.f32 %v1003, %v1003
      %v1068 = vmul.f32 %v1004, %v1004
      %v1069 = vmul.f32 %v1005, %v1005
      %v1070 = vmul.f32 %v1006, %v1006
      %v1071 = vmul.f32 %v1007, %v1007
      %v1072 = vadd.f32 %v1025, %v1056
      %v1073 = vadd.f32 %v1027, %v1057
      %v1074 = vadd.f32 %v1029, %v1058
      %v1075 = vadd.f32 %v1031, %v1059
      %v1076 = vadd.f32 %v1033, %v1060
      %v1077 = vadd.f32 %v1035, %v1061
      %v1078 = vadd.f32 %v1037, %v1062
      %v1079 = vadd.f32 %v1039, %v1063
      %v1080 = vadd.f32 %v1041, %v1064
      %v1081 = vadd.f32 %v1043, %v1065
      %v1082 = vadd.f32 %v1045, %v1066
      %v1083 = vadd.f32 %v1047, %v1067
      %v1084 = vadd.f32 %v1049, %v1068
      %v1085 = vadd.f32 %v1051, %v1069
      %v1086 = vadd.f32 %v1053, %v1070
      %v1087 = vadd.f32 %v1055, %v1071
      %v1088 = vadd.f32 %v1072, %v961
      %v1089 = vadd.f32 %v1073, %v963
      %v1090 = vadd.f32 %v1074, %v965
      %v1091 = vadd.f32 %v1075, %v967
      %v1092 = vadd.f32 %v1076, %v969
      %v1093 = vadd.f32 %v1077, %v971
      %v1094 = vadd.f32 %v1078, %v973
      %v1095 = vadd.f32 %v1079, %v975
      %v1096 = vadd.f32 %v1080, %v977
      %v1097 = vadd.f32 %v1081, %v979
      %v1098 = vadd.f32 %v1082, %v981
      %v1099 = vadd.f32 %v1083, %v983
      %v1100 = vadd.f32 %v1084, %v985
      %v1101 = vadd.f32 %v1085, %v987
      %v1102 = vadd.f32 %v1086, %v989
      %v1103 = vadd.f32 %v1087, %v991
      %v1104 = vadd.f32 %v1088, %v1089
      %v1105 = vadd.f32 %v1104, %v1090
      %v1106 = vadd.f32 %v1105, %v1091
      %v1107 = vadd.f32 %v1106, %v1092
      %v1108 = vadd.f32 %v1107, %v1093
      %v1109 = vadd.f32 %v1108, %v1094
      %v1110 = vadd.f32 %v1109, %v1095
      %v1111 = vadd.f32 %v1110, %v1096
      %v1112 = vadd.f32 %v1111, %v1097
      %v1113 = vadd.f32 %v1112, %v1098
      %v1114 = vadd.f32 %v1113, %v1099
      %v1115 = vadd.f32 %v1114, %v1100
      %v1116 = vadd.f32 %v1115, %v1101
      %v1117 = vadd.f32 %v1116, %v1102
      %v1118 = vadd.f32 %v1117, %v1103
      %v1119 = vrot.slane %v1118, 4
      %v1120 = vadd.f32 %v1118, %v1119
      %v1121 = vrot.slane %v1120, 2
      %v1122 = vadd.f32 %v1120, %v1121
      %v1123 = vrot.slane %v1122, 1
      %v1124 = vadd.f32 %v1122, %v1123
      %v1125 = vstv %s598
      %v1126 = vmul.f32 %v1125, %v1124
      %v1127 = vadd.f32 %v599, %v1126
      %1128 = vst [vmem:[#allocation2] sm:$0x1] %v1127
      %v1129 = vld [vmem:[#allocation3] sm:$0x1]
      %v1130 = vld [vmem:[#allocation5] sm:$0xff]
      %v1131 = vld [vmem:[#allocation5 + $0x8] sm:$0xff]
      %v1132 = vld [vmem:[#allocation5 + $0x10] sm:$0xff]
      %v1133 = vld [vmem:[#allocation5 + $0x18] sm:$0xff]
      %v1134 = vld [vmem:[#allocation5 + $0x20] sm:$0xff]
      %v1135 = vld [vmem:[#allocation5 + $0x28] sm:$0xff]
      %v1136 = vld [vmem:[#allocation5 + $0x30] sm:$0xff]
      %v1137 = vld [vmem:[#allocation5 + $0x38] sm:$0xff]
      %v1138 = vld [vmem:[#allocation5 + $0x40] sm:$0xff]
      %v1139 = vld [vmem:[#allocation5 + $0x48] sm:$0xff]
      %v1140 = vld [vmem:[#allocation5 + $0x50] sm:$0xff]
      %v1141 = vld [vmem:[#allocation5 + $0x58] sm:$0xff]
      %v1142 = vld [vmem:[#allocation5 + $0x60] sm:$0xff]
      %v1143 = vld [vmem:[#allocation5 + $0x68] sm:$0xff]
      %v1144 = vld [vmem:[#allocation5 + $0x70] sm:$0xff]
      %v1145 = vld [vmem:[#allocation5 + $0x78] sm:$0xff]
      %v1146 = vld [vmem:[#allocation8] sm:$0xff]
      %v1147 = vld [vmem:[#allocation8 + $0x8] sm:$0xff]
      %v1148 = vld [vmem:[#allocation8 + $0x10] sm:$0xff]
      %v1149 = vld [vmem:[#allocation8 + $0x18] sm:$0xff]
      %v1150 = vld [vmem:[#allocation8 + $0x20] sm:$0xff]
      %v1151 = vld [vmem:[#allocation8 + $0x28] sm:$0xff]
      %v1152 = vld [vmem:[#allocation8 + $0x30] sm:$0xff]
      %v1153 = vld [vmem:[#allocation8 + $0x38] sm:$0xff]
      %v1154 = vld [vmem:[#allocation8 + $0x40] sm:$0xff]
      %v1155 = vld [vmem:[#allocation8 + $0x48] sm:$0xff]
      %v1156 = vld [vmem:[#allocation8 + $0x50] sm:$0xff]
      %v1157 = vld [vmem:[#allocation8 + $0x58] sm:$0xff]
      %v1158 = vld [vmem:[#allocation8 + $0x60] sm:$0xff]
      %v1159 = vld [vmem:[#allocation8 + $0x68] sm:$0xff]
      %v1160 = vld [vmem:[#allocation8 + $0x70] sm:$0xff]
      %v1161 = vld [vmem:[#allocation8 + $0x78] sm:$0xff]
      %1162 = vmatprep.subr.mxu0 0.0
      %1163 = vmatpush1.xpose.msra.mxu0 %v1146
      %1164 = vmatprep.subr.mxu0 0.0
      %1165 = vmatpush1.xpose.msra.mxu0 %v1147
      %1166 = vmatprep.subr.mxu0 0.0
      %1167 = vmatpush1.xpose.msra.mxu0 %v1148
      %1168 = vmatprep.subr.mxu0 0.0
      %1169 = vmatpush1.xpose.msra.mxu0 %v1149
      %1170 = vmatprep.subr.mxu0 0.0
      %1171 = vmatpush1.xpose.msra.mxu0 %v1150
      %1172 = vmatprep.subr.mxu0 0.0
      %1173 = vmatpush1.xpose.msra.mxu0 %v1151
      %1174 = vmatprep.subr.mxu0 0.0
      %1175 = vmatpush1.xpose.msra.mxu0 %v1152
      %1176 = vmatprep.subr.mxu0 0.0
      %1177 = vmatpush1.xpose.msra.mxu0 %v1153
      %1178 = vmatprep.subr.mxu0 0.0
      %1179 = vmatpush1.xpose.msra.mxu0 %v1154
      %1180 = vmatprep.subr.mxu0 0.0
      %1181 = vmatpush1.xpose.msra.mxu0 %v1155
      %1182 = vmatprep.subr.mxu0 0.0
      %1183 = vmatpush1.xpose.msra.mxu0 %v1156
      %1184 = vmatprep.subr.mxu0 0.0
      %1185 = vmatpush1.xpose.msra.mxu0 %v1157
      %1186 = vmatprep.subr.mxu0 0.0
      %1187 = vmatpush1.xpose.msra.mxu0 %v1158
      %1188 = vmatprep.subr.mxu0 0.0
      %1189 = vmatpush1.xpose.msra.mxu0 %v1159
      %1190 = vmatprep.subr.mxu0 0.0
      %1191 = vmatpush1.xpose.msra.mxu0 %v1160
      %1192 = vmatprep.subr.mxu0 0.0
      %1193 = vmatpush1.xpose.msra.mxu0 %v1161
      %1194 = vmatprep.subr.mxu0 0.0
      %1195 = vmatpush1.xpose.msra.mxu0 0.0
      %1196 = vmatprep.subr.mxu0 0.0
      %1197 = vmatpush1.xpose.msra.mxu0 0.0
      %1198 = vmatprep.subr.mxu0 0.0
      %1199 = vmatpush1.xpose.msra.mxu0 0.0
      %1200 = vmatprep.subr.mxu0 0.0
      %1201 = vmatpush1.xpose.msra.mxu0 0.0
      %1202 = vmatprep.subr.mxu0 0.0
      %1203 = vmatpush1.xpose.msra.mxu0 0.0
      %1204 = vmatprep.subr.mxu0 0.0
      %1205 = vmatpush1.xpose.msra.mxu0 0.0
      %1206 = vmatprep.subr.mxu0 0.0
      %1207 = vmatpush1.xpose.msra.mxu0 0.0
      %1208 = vmatprep.subr.mxu0 0.0
      %1209 = vmatpush1.xpose.msra.mxu0 0.0
      %1210 = vmatprep.subr.mxu0 0.0
      %1211 = vmatpush1.xpose.msra.mxu0 0.0
      %1212 = vmatprep.subr.mxu0 0.0
      %1213 = vmatpush1.xpose.msra.mxu0 0.0
      %1214 = vmatprep.subr.mxu0 0.0
      %1215 = vmatpush1.xpose.msra.mxu0 0.0
      %1216 = vmatprep.subr.mxu0 0.0
      %1217 = vmatpush1.xpose.msra.mxu0 0.0
      %1218 = vmatprep.subr.mxu0 0.0
      %1219 = vmatpush1.xpose.msra.mxu0 0.0
      %1220 = vmatprep.subr.mxu0 0.0
      %1221 = vmatpush1.xpose.msra.mxu0 0.0
      %1222 = vmatprep.subr.mxu0 0.0
      %1223 = vmatpush1.xpose.msra.mxu0 0.0
      %1224 = vmatprep.subr.mxu0 0.0
      %1225 = vmatpush1.xpose.msra.mxu0 0.0
      %1226 = vmatprep.mubr.f32.mxu0 0.0
      %1227 = vmatmul.mubr.f32.gmra.mrb[0].mxu0 %v1130
      %v1228 = vpop.f32.mrb[0].mxu0
      %v1229 = vadd.f32 0.0, %v1228
      %v1230 = vpop.f32.mrb[0].mxu0
      %1231 = vmatprep.mubr.f32.mxu0 0.0
      %1232 = vmatmul.mubr.f32.gmra.mrb[0].mxu0 %v1131
      %v1233 = vpop.f32.mrb[0].mxu0
      %v1234 = vadd.f32 0.0, %v1233
      %v1235 = vpop.f32.mrb[0].mxu0
      %1236 = vmatprep.mubr.f32.mxu0 0.0
      %1237 = vmatmul.mubr.f32.gmra.mrb[0].mxu0 %v1132
      %v1238 = vpop.f32.mrb[0].mxu0
      %v1239 = vadd.f32 0.0, %v1238
      %v1240 = vpop.f32.mrb[0].mxu0
      %1241 = vmatprep.mubr.f32.mxu0 0.0
      %1242 = vmatmul.mubr.f32.gmra.mrb[0].mxu0 %v1133
      %v1243 = vpop.f32.mrb[0].mxu0
      %v1244 = vadd.f32 0.0, %v1243
      %v1245 = vpop.f32.mrb[0].mxu0
      %1246 = vmatprep.mubr.f32.mxu0 0.0
      %1247 = vmatmul.mubr.f32.gmra.mrb[0].mxu0 %v1134
      %v1248 = vpop.f32.mrb[0].mxu0
      %v1249 = vadd.f32 0.0, %v1248
      %v1250 = vpop.f32.mrb[0].mxu0
      %1251 = vmatprep.mubr.f32.mxu0 0.0
      %1252 = vmatmul.mubr.f32.gmra.mrb[0].mxu0 %v1135
      %v1253 = vpop.f32.mrb[0].mxu0
      %v1254 = vadd.f32 0.0, %v1253
      %v1255 = vpop.f32.mrb[0].mxu0
      %1256 = vmatprep.mubr.f32.mxu0 0.0
      %1257 = vmatmul.mubr.f32.gmra.mrb[0].mxu0 %v1136
      %v1258 = vpop.f32.mrb[0].mxu0
      %v1259 = vadd.f32 0.0, %v1258
      %v1260 = vpop.f32.mrb[0].mxu0
      %1261 = vmatprep.mubr.f32.mxu0 0.0
      %1262 = vmatmul.mubr.f32.gmra.mrb[0].mxu0 %v1137
      %v1263 = vpop.f32.mrb[0].mxu0
      %v1264 = vadd.f32 0.0, %v1263
      %v1265 = vpop.f32.mrb[0].mxu0
      %1266 = vmatprep.mubr.f32.mxu0 0.0
      %1267 = vmatmul.mubr.f32.gmra.mrb[0].mxu0 %v1138
      %v1268 = vpop.f32.mrb[0].mxu0
      %v1269 = vadd.f32 0.0, %v1268
      %v1270 = vpop.f32.mrb[0].mxu0
      %1271 = vmatprep.mubr.f32.mxu0 0.0
      %1272 = vmatmul.mubr.f32.gmra.mrb[0].mxu0 %v1139
      %v1273 = vpop.f32.mrb[0].mxu0
      %v1274 = vadd.f32 0.0, %v1273
      %v1275 = vpop.f32.mrb[0].mxu0
      %1276 = vmatprep.mubr.f32.mxu0 0.0
      %1277 = vmatmul.mubr.f32.gmra.mrb[0].mxu0 %v1140
      %v1278 = vpop.f32.mrb[0].mxu0
      %v1279 = vadd.f32 0.0, %v1278
      %v1280 = vpop.f32.mrb[0].mxu0
      %1281 = vmatprep.mubr.f32.mxu0 0.0
      %1282 = vmatmul.mubr.f32.gmra.mrb[0].mxu0 %v1141
      %v1283 = vpop.f32.mrb[0].mxu0
      %v1284 = vadd.f32 0.0, %v1283
      %v1285 = vpop.f32.mrb[0].mxu0
      %1286 = vmatprep.mubr.f32.mxu0 0.0
      %1287 = vmatmul.mubr.f32.gmra.mrb[0].mxu0 %v1142
      %v1288 = vpop.f32.mrb[0].mxu0
      %v1289 = vadd.f32 0.0, %v1288
      %v1290 = vpop.f32.mrb[0].mxu0
      %1291 = vmatprep.mubr.f32.mxu0 0.0
      %1292 = vmatmul.mubr.f32.gmra.mrb[0].mxu0 %v1143
      %v1293 = vpop.f32.mrb[0].mxu0
      %v1294 = vadd.f32 0.0, %v1293
      %v1295 = vpop.f32.mrb[0].mxu0
      %1296 = vmatprep.mubr.f32.mxu0 0.0
      %1297 = vmatmul.mubr.f32.gmra.mrb[0].mxu0 %v1144
      %v1298 = vpop.f32.mrb[0].mxu0
      %v1299 = vadd.f32 0.0, %v1298
      %v1300 = vpop.f32.mrb[0].mxu0
      %1301 = vmatprep.mubr.f32.mxu0 0.0
      %1302 = vmatmul.mubr.f32.gmra.mrb[0].mxu0 %v1145
      %v1303 = vpop.f32.mrb[0].mxu0
      %v1304 = vadd.f32 0.0, %v1303
      %v1305 = vpop.f32.mrb[0].mxu0
      %1306 = vdwg.mxu0
      %v1307 = vld [vmem:[%s6] sm:$0xff]
      %v1308 = vld [vmem:[%s6 + $0x8] sm:$0xff]
      %v1309 = vld [vmem:[%s6 + $0x10] sm:$0xff]
      %v1310 = vld [vmem:[%s6 + $0x18] sm:$0xff]
      %v1311 = vld [vmem:[%s6 + $0x20] sm:$0xff]
      %v1312 = vld [vmem:[%s6 + $0x28] sm:$0xff]
      %v1313 = vld [vmem:[%s6 + $0x30] sm:$0xff]
      %v1314 = vld [vmem:[%s6 + $0x38] sm:$0xff]
      %v1315 = vld [vmem:[%s6 + $0x40] sm:$0xff]
      %v1316 = vld [vmem:[%s6 + $0x48] sm:$0xff]
      %v1317 = vld [vmem:[%s6 + $0x50] sm:$0xff]
      %v1318 = vld [vmem:[%s6 + $0x58] sm:$0xff]
      %v1319 = vld [vmem:[%s6 + $0x60] sm:$0xff]
      %v1320 = vld [vmem:[%s6 + $0x68] sm:$0xff]
      %v1321 = vld [vmem:[%s6 + $0x70] sm:$0xff]
      %v1322 = vld [vmem:[%s6 + $0x78] sm:$0xff]
      %v1323 = vld [vmem:[%s7] sm:$0x1]
      %1325 = vset.pattern.permute.xlu0 0
      %1326 = vperm.xlu0 %1325, %v1307
      %v1327 = vpop.permute.xlu0 %1326
      %1330 = vset.pattern.permute.xlu0 0
      %1331 = vperm.xlu0 %1330, %v1308
      %v1332 = vpop.permute.xlu0 %1331
      %1335 = vset.pattern.permute.xlu0 0
      %1336 = vperm.xlu0 %1335, %v1309
      %v1337 = vpop.permute.xlu0 %1336
      %1340 = vset.pattern.permute.xlu0 0
      %1341 = vperm.xlu0 %1340, %v1310
      %v1342 = vpop.permute.xlu0 %1341
      %1345 = vset.pattern.permute.xlu0 0
      %1346 = vperm.xlu0 %1345, %v1311
      %v1347 = vpop.permute.xlu0 %1346
      %1350 = vset.pattern.permute.xlu0 0
      %1351 = vperm.xlu0 %1350, %v1312
      %v1352 = vpop.permute.xlu0 %1351
      %1355 = vset.pattern.permute.xlu0 0
      %1356 = vperm.xlu0 %1355, %v1313
      %v1357 = vpop.permute.xlu0 %1356
      %1360 = vset.pattern.permute.xlu0 0
      %1361 = vperm.xlu0 %1360, %v1314
      %v1362 = vpop.permute.xlu0 %1361
      %1365 = vset.pattern.permute.xlu0 0
      %1366 = vperm.xlu0 %1365, %v1315
      %v1367 = vpop.permute.xlu0 %1366
      %1370 = vset.pattern.permute.xlu0 0
      %1371 = vperm.xlu0 %1370, %v1316
      %v1372 = vpop.permute.xlu0 %1371
      %1375 = vset.pattern.permute.xlu0 0
      %1376 = vperm.xlu0 %1375, %v1317
      %v1377 = vpop.permute.xlu0 %1376
      %1380 = vset.pattern.permute.xlu0 0
      %1381 = vperm.xlu0 %1380, %v1318
      %v1382 = vpop.permute.xlu0 %1381
      %1385 = vset.pattern.permute.xlu0 0
      %1386 = vperm.xlu0 %1385, %v1319
      %v1387 = vpop.permute.xlu0 %1386
      %1390 = vset.pattern.permute.xlu0 0
      %1391 = vperm.xlu0 %1390, %v1320
      %v1392 = vpop.permute.xlu0 %1391
      %1395 = vset.pattern.permute.xlu0 0
      %1396 = vperm.xlu0 %1395, %v1321
      %v1397 = vpop.permute.xlu0 %1396
      %1400 = vset.pattern.permute.xlu0 0
      %1401 = vperm.xlu0 %1400, %v1322
      %v1402 = vpop.permute.xlu0 %1401
      %v1405 = vlaneseq
      %v1406 = vshrl.u32 %v1405, 7
      %v1407 = vsub.s32 0, %v1406
      %v1408 = vrot.slane %v1323, %v1407
      %v1410 = vadd.f32 %v1327, %v1408
      %v1411 = vadd.f32 %v1332, %v1408
      %v1412 = vadd.f32 %v1337, %v1408
      %v1413 = vadd.f32 %v1342, %v1408
      %v1414 = vadd.f32 %v1347, %v1408
      %v1415 = vadd.f32 %v1352, %v1408
      %v1416 = vadd.f32 %v1357, %v1408
      %v1417 = vadd.f32 %v1362, %v1408
      %v1418 = vadd.f32 %v1367, %v1408
      %v1419 = vadd.f32 %v1372, %v1408
      %v1420 = vadd.f32 %v1377, %v1408
      %v1421 = vadd.f32 %v1382, %v1408
      %v1422 = vadd.f32 %v1387, %v1408
      %v1423 = vadd.f32 %v1392, %v1408
      %v1424 = vadd.f32 %v1397, %v1408
      %v1425 = vadd.f32 %v1402, %v1408
      %v1426 = vmul.f32 %v1229, 2.0
      %v1427 = vmul.f32 %v1234, 2.0
      %v1428 = vmul.f32 %v1239, 2.0
      %v1429 = vmul.f32 %v1244, 2.0
      %v1430 = vmul.f32 %v1249, 2.0
      %v1431 = vmul.f32 %v1254, 2.0
      %v1432 = vmul.f32 %v1259, 2.0
      %v1433 = vmul.f32 %v1264, 2.0
      %v1434 = vmul.f32 %v1269, 2.0
      %v1435 = vmul.f32 %v1274, 2.0
      %v1436 = vmul.f32 %v1279, 2.0
      %v1437 = vmul.f32 %v1284, 2.0
      %v1438 = vmul.f32 %v1289, 2.0
      %v1439 = vmul.f32 %v1294, 2.0
      %v1440 = vmul.f32 %v1299, 2.0
      %v1441 = vmul.f32 %v1304, 2.0
      %v1442 = vsub.f32 %v1410, %v1426
      %v1443 = vsub.f32 %v1411, %v1427
      %v1444 = vsub.f32 %v1412, %v1428
      %v1445 = vsub.f32 %v1413, %v1429
      %v1446 = vsub.f32 %v1414, %v1430
      %v1447 = vsub.f32 %v1415, %v1431
      %v1448 = vsub.f32 %v1416, %v1432
      %v1449 = vsub.f32 %v1417, %v1433
      %v1450 = vsub.f32 %v1418, %v1434
      %v1451 = vsub.f32 %v1419, %v1435
      %v1452 = vsub.f32 %v1420, %v1436
      %v1453 = vsub.f32 %v1421, %v1437
      %v1454 = vsub.f32 %v1422, %v1438
      %v1455 = vsub.f32 %v1423, %v1439
      %v1456 = vsub.f32 %v1424, %v1440
      %v1457 = vsub.f32 %v1425, %v1441
      %v1458 = vmax.f32 %v1442, 0.0
      %v1459 = vmax.f32 %v1443, 0.0
      %v1460 = vmax.f32 %v1444, 0.0
      %v1461 = vmax.f32 %v1445, 0.0
      %v1462 = vmax.f32 %v1446, 0.0
      %v1463 = vmax.f32 %v1447, 0.0
      %v1464 = vmax.f32 %v1448, 0.0
      %v1465 = vmax.f32 %v1449, 0.0
      %v1466 = vmax.f32 %v1450, 0.0
      %v1467 = vmax.f32 %v1451, 0.0
      %v1468 = vmax.f32 %v1452, 0.0
      %v1469 = vmax.f32 %v1453, 0.0
      %v1470 = vmax.f32 %v1454, 0.0
      %v1471 = vmax.f32 %v1455, 0.0
      %v1472 = vmax.f32 %v1456, 0.0
      %v1473 = vmax.f32 %v1457, 0.0
      %v1474 = vmul.f32 %v1458, -0.005
      %v1475 = vmul.f32 %v1459, -0.005
      %v1476 = vmul.f32 %v1460, -0.005
      %v1477 = vmul.f32 %v1461, -0.005
      %v1478 = vmul.f32 %v1462, -0.005
      %v1479 = vmul.f32 %v1463, -0.005
      %v1480 = vmul.f32 %v1464, -0.005
      %v1481 = vmul.f32 %v1465, -0.005
      %v1482 = vmul.f32 %v1466, -0.005
      %v1483 = vmul.f32 %v1467, -0.005
      %v1484 = vmul.f32 %v1468, -0.005
      %v1485 = vmul.f32 %v1469, -0.005
      %v1486 = vmul.f32 %v1470, -0.005
      %v1487 = vmul.f32 %v1471, -0.005
      %v1488 = vmul.f32 %v1472, -0.005
      %v1489 = vmul.f32 %v1473, -0.005
      %v1490 = vmul.f32 %v1474, 1.442695
      %v1491 = vpow.pop %v1490
      %v1492 = vmul.f32 %v1475, 1.442695
      %v1493 = vpow.pop %v1492
      %v1494 = vmul.f32 %v1476, 1.442695
      %v1495 = vpow.pop %v1494
      %v1496 = vmul.f32 %v1477, 1.442695
      %v1497 = vpow.pop %v1496
      %v1498 = vmul.f32 %v1478, 1.442695
      %v1499 = vpow.pop %v1498
      %v1500 = vmul.f32 %v1479, 1.442695
      %v1501 = vpow.pop %v1500
      %v1502 = vmul.f32 %v1480, 1.442695
      %v1503 = vpow.pop %v1502
      %v1504 = vmul.f32 %v1481, 1.442695
      %v1505 = vpow.pop %v1504
      %v1506 = vmul.f32 %v1482, 1.442695
      %v1507 = vpow.pop %v1506
      %v1508 = vmul.f32 %v1483, 1.442695
      %v1509 = vpow.pop %v1508
      %v1510 = vmul.f32 %v1484, 1.442695
      %v1511 = vpow.pop %v1510
      %v1512 = vmul.f32 %v1485, 1.442695
      %v1513 = vpow.pop %v1512
      %v1514 = vmul.f32 %v1486, 1.442695
      %v1515 = vpow.pop %v1514
      %v1516 = vmul.f32 %v1487, 1.442695
      %v1517 = vpow.pop %v1516
      %v1518 = vmul.f32 %v1488, 1.442695
      %v1519 = vpow.pop %v1518
      %v1520 = vmul.f32 %v1489, 1.442695
      %v1521 = vpow.pop %v1520
      %v1522 = vmul.f32 %v1491, %v1491
      %v1523 = vmul.f32 %v1493, %v1493
      %v1524 = vmul.f32 %v1495, %v1495
      %v1525 = vmul.f32 %v1497, %v1497
      %v1526 = vmul.f32 %v1499, %v1499
      %v1527 = vmul.f32 %v1501, %v1501
      %v1528 = vmul.f32 %v1503, %v1503
      %v1529 = vmul.f32 %v1505, %v1505
      %v1530 = vmul.f32 %v1507, %v1507
      %v1531 = vmul.f32 %v1509, %v1509
      %v1532 = vmul.f32 %v1511, %v1511
      %v1533 = vmul.f32 %v1513, %v1513
      %v1534 = vmul.f32 %v1515, %v1515
      %v1535 = vmul.f32 %v1517, %v1517
      %v1536 = vmul.f32 %v1519, %v1519
      %v1537 = vmul.f32 %v1521, %v1521
      %v1538 = vmul.f32 %v1458, -0.5
      %v1539 = vmul.f32 %v1459, -0.5
      %v1540 = vmul.f32 %v1460, -0.5
      %v1541 = vmul.f32 %v1461, -0.5
      %v1542 = vmul.f32 %v1462, -0.5
      %v1543 = vmul.f32 %v1463, -0.5
      %v1544 = vmul.f32 %v1464, -0.5
      %v1545 = vmul.f32 %v1465, -0.5
      %v1546 = vmul.f32 %v1466, -0.5
      %v1547 = vmul.f32 %v1467, -0.5
      %v1548 = vmul.f32 %v1468, -0.5
      %v1549 = vmul.f32 %v1469, -0.5
      %v1550 = vmul.f32 %v1470, -0.5
      %v1551 = vmul.f32 %v1471, -0.5
      %v1552 = vmul.f32 %v1472, -0.5
      %v1553 = vmul.f32 %v1473, -0.5
      %v1554 = vmul.f32 %v1538, 1.442695
      %v1555 = vpow.pop %v1554
      %v1556 = vmul.f32 %v1539, 1.442695
      %v1557 = vpow.pop %v1556
      %v1558 = vmul.f32 %v1540, 1.442695
      %v1559 = vpow.pop %v1558
      %v1560 = vmul.f32 %v1541, 1.442695
      %v1561 = vpow.pop %v1560
      %v1562 = vmul.f32 %v1542, 1.442695
      %v1563 = vpow.pop %v1562
      %v1564 = vmul.f32 %v1543, 1.442695
      %v1565 = vpow.pop %v1564
      %v1566 = vmul.f32 %v1544, 1.442695
      %v1567 = vpow.pop %v1566
      %v1568 = vmul.f32 %v1545, 1.442695
      %v1569 = vpow.pop %v1568
      %v1570 = vmul.f32 %v1546, 1.442695
      %v1571 = vpow.pop %v1570
      %v1572 = vmul.f32 %v1547, 1.442695
      %v1573 = vpow.pop %v1572
      %v1574 = vmul.f32 %v1548, 1.442695
      %v1575 = vpow.pop %v1574
      %v1576 = vmul.f32 %v1549, 1.442695
      %v1577 = vpow.pop %v1576
      %v1578 = vmul.f32 %v1550, 1.442695
      %v1579 = vpow.pop %v1578
      %v1580 = vmul.f32 %v1551, 1.442695
      %v1581 = vpow.pop %v1580
      %v1582 = vmul.f32 %v1552, 1.442695
      %v1583 = vpow.pop %v1582
      %v1584 = vmul.f32 %v1553, 1.442695
      %v1585 = vpow.pop %v1584
      %v1586 = vmul.f32 %v1522, %v1522
      %v1587 = vmul.f32 %v1523, %v1523
      %v1588 = vmul.f32 %v1524, %v1524
      %v1589 = vmul.f32 %v1525, %v1525
      %v1590 = vmul.f32 %v1526, %v1526
      %v1591 = vmul.f32 %v1527, %v1527
      %v1592 = vmul.f32 %v1528, %v1528
      %v1593 = vmul.f32 %v1529, %v1529
      %v1594 = vmul.f32 %v1530, %v1530
      %v1595 = vmul.f32 %v1531, %v1531
      %v1596 = vmul.f32 %v1532, %v1532
      %v1597 = vmul.f32 %v1533, %v1533
      %v1598 = vmul.f32 %v1534, %v1534
      %v1599 = vmul.f32 %v1535, %v1535
      %v1600 = vmul.f32 %v1536, %v1536
      %v1601 = vmul.f32 %v1537, %v1537
      %v1602 = vadd.f32 %v1555, %v1586
      %v1603 = vadd.f32 %v1557, %v1587
      %v1604 = vadd.f32 %v1559, %v1588
      %v1605 = vadd.f32 %v1561, %v1589
      %v1606 = vadd.f32 %v1563, %v1590
      %v1607 = vadd.f32 %v1565, %v1591
      %v1608 = vadd.f32 %v1567, %v1592
      %v1609 = vadd.f32 %v1569, %v1593
      %v1610 = vadd.f32 %v1571, %v1594
      %v1611 = vadd.f32 %v1573, %v1595
      %v1612 = vadd.f32 %v1575, %v1596
      %v1613 = vadd.f32 %v1577, %v1597
      %v1614 = vadd.f32 %v1579, %v1598
      %v1615 = vadd.f32 %v1581, %v1599
      %v1616 = vadd.f32 %v1583, %v1600
      %v1617 = vadd.f32 %v1585, %v1601
      %v1618 = vadd.f32 %v1602, %v1491
      %v1619 = vadd.f32 %v1603, %v1493
      %v1620 = vadd.f32 %v1604, %v1495
      %v1621 = vadd.f32 %v1605, %v1497
      %v1622 = vadd.f32 %v1606, %v1499
      %v1623 = vadd.f32 %v1607, %v1501
      %v1624 = vadd.f32 %v1608, %v1503
      %v1625 = vadd.f32 %v1609, %v1505
      %v1626 = vadd.f32 %v1610, %v1507
      %v1627 = vadd.f32 %v1611, %v1509
      %v1628 = vadd.f32 %v1612, %v1511
      %v1629 = vadd.f32 %v1613, %v1513
      %v1630 = vadd.f32 %v1614, %v1515
      %v1631 = vadd.f32 %v1615, %v1517
      %v1632 = vadd.f32 %v1616, %v1519
      %v1633 = vadd.f32 %v1617, %v1521
      %v1634 = vadd.f32 %v1618, %v1619
      %v1635 = vadd.f32 %v1634, %v1620
      %v1636 = vadd.f32 %v1635, %v1621
      %v1637 = vadd.f32 %v1636, %v1622
      %v1638 = vadd.f32 %v1637, %v1623
      %v1639 = vadd.f32 %v1638, %v1624
      %v1640 = vadd.f32 %v1639, %v1625
      %v1641 = vadd.f32 %v1640, %v1626
      %v1642 = vadd.f32 %v1641, %v1627
      %v1643 = vadd.f32 %v1642, %v1628
      %v1644 = vadd.f32 %v1643, %v1629
      %v1645 = vadd.f32 %v1644, %v1630
      %v1646 = vadd.f32 %v1645, %v1631
      %v1647 = vadd.f32 %v1646, %v1632
      %v1648 = vadd.f32 %v1647, %v1633
      %v1649 = vrot.slane %v1648, 4
      %v1650 = vadd.f32 %v1648, %v1649
      %v1651 = vrot.slane %v1650, 2
      %v1652 = vadd.f32 %v1650, %v1651
      %v1653 = vrot.slane %v1652, 1
      %v1654 = vadd.f32 %v1652, %v1653
      %v1655 = vmul.f32 %v1125, %v1654
      %v1656 = vadd.f32 %v1129, %v1655
      %1657 = vst [vmem:[#allocation3] sm:$0x1] %v1656
    $region49: #{tpu_custom_call.1} parent=1 // pred_fallthru
      _
    // Predicated region
    $region50: #{tpu_custom_call.1} parent=1 // pred_check
      %p1658 = pneg %p58
    $region51: #{tpu_custom_call.1} parent=1 // pred_check_branch
      %1660 = sbr.rel (%p1658) target = $region53
    $region52: #{tpu_custom_call.1} parent=1 // pred_region
      %v1661 = vlaneseq
      %v1662 = vshrl.u32 %v1661, 7
      %vm1663 = vcmp.eq.s32.totalorder %v1662, 0
      %v1664 = vld [vmem:[#allocation2] sm:$0x1]
      %vm1665 = vcmp.eq.s32.totalorder %v1662, 1
      %v1666 = vld [vmem:[#allocation3] sm:$0x1]
      %vm1667 = vcmp.eq.s32.totalorder %v1662, 2
      %v1668 = vld [vmem:[#allocation4] sm:$0x1]
      %v1670 = vlaneseq
      %v1671 = vshrl.u32 %v1670, 7
      %v1672 = vsub.s32 0, %v1671
      %v1673 = vrot.slane %v1668, %v1672
      %v1675 = vsel %vm1667, %v1673, 0.0
      %v1677 = vlaneseq
      %v1678 = vshrl.u32 %v1677, 7
      %v1679 = vsub.s32 0, %v1678
      %v1680 = vrot.slane %v1666, %v1679
      %v1682 = vsel %vm1665, %v1680, %v1675
      %v1684 = vlaneseq
      %v1685 = vshrl.u32 %v1684, 7
      %v1686 = vsub.s32 0, %v1685
      %v1687 = vrot.slane %v1664, %v1686
      %v1689 = vsel %vm1663, %v1687, %v1682
      %1690 = vst [vmem:[#allocation10] sm:$0xff] %v1689
    $region53: #{tpu_custom_call.1} parent=1 // pred_fallthru
      _
    // Predicated region
    $region54: #{tpu_custom_call.1} parent=1 // pred_check
      _
    $region55: #{tpu_custom_call.1} parent=1 // pred_check_branch
      %1692 = sbr.rel (0) target = $region57
    $region56: #{tpu_custom_call.1} parent=1 // pred_region
      %s1694 = ssub.s32 128, 128
      %1695 = vsyncadd [#allocation7], %s1694
      %s1697 = sshll.u32 [#allocation10], 4
      %s1698 = int_to_ptr.vmem [resolvable:$true] %s1697
      %1700 = dma.vmem_to_hbm [thread:$0]  %s1698, 128, %s8, [#allocation7]
    $region57: #{tpu_custom_call.1} parent=1 // pred_fallthru
      _
    // Predicated region
    $region58: #{tpu_custom_call.1} parent=1 // pred_check
      _
    $region59: #{tpu_custom_call.1} parent=1 // pred_check_branch
      %1702 = sbr.rel (0) target = $region61
    $region60: #{tpu_custom_call.1} parent=1 // pred_region
      %1703 = dma.done [#allocation7], 128
    $region61: #{tpu_custom_call.1} parent=1 // pred_fallthru
      _
    %1704 = vsyncpa [#allocation6], 1
    %1705 = vsyncpa [#allocation9], 1
    %1706 = vsyncpa [#allocation7], 1

</llo_original>
